<compile_context>
chip_gen: v6e
topology: v6e:2x2x1
jax: 0.10.0
libtpu: 0.0.40
codegen_flags: <defaults>
</compile_context>

<pallas_src>
import functools

import jax
import jax.numpy as jnp
from jax import lax
from jax.experimental import pallas as pl
from jax.experimental.pallas import tpu as pltpu

_EPS = 1e-5
# Interior offset used for the in-kernel zero-padded scratch buffers. 16 keeps
# the interior store sublane-tile aligned for both f32 (8) and bf16 (16).
_SUBPAD = 16


# ----------------------------------------------------------------------------
# Fused kernel: one grid step = one batch image.
#   conv1 (bn1 scale folded) + bias + relu          -> single MXU matmul
#   conv2 (bn2 scale folded) [+ folded 1x1 shortcut] -> single MXU matmul
#   + bias + residual + relu
# h1 lives only in VMEM scratch (never written to HBM).
# ----------------------------------------------------------------------------
def _basic_block_kernel(x_ref, w1_ref, b1_ref, w2_ref, b2_ref, o_ref,
                        xpad_ref, hpad_ref, *, H, W, Cin, Cp, has_proj):
    P = _SUBPAD
    x = x_ref[0]                                      # (H, W, Cin), bf16

    def im2col(t, C):
        # t: (H+2, W+2P, C); live data at rows [1:H+1], cols [P:P+W];
        # the logical halo columns are P-1 and P+W (both zero).
        cols = [t[dy:dy + H, P - 1 + dx:P - 1 + dx + W, :].reshape(H * W, C)
                for dy in range(3) for dx in range(3)]
        return jnp.concatenate(cols, axis=-1)         # (H*W, 9*C)

    # ---- zero-padded copy of x in VMEM (no XLA pad, no extra HBM pass) ------
    xpad_ref[...] = jnp.zeros(xpad_ref.shape, xpad_ref.dtype)
    xpad_ref[1:H + 1, P:P + W, :] = x                 # aligned interior store

    # ---- conv1 (+bn1 scale pre-folded) + bias + relu: one matmul, K=9*Cin ---
    h1 = jnp.dot(im2col(xpad_ref[...], Cin), w1_ref[...],
                 preferred_element_type=jnp.float32)  # (H*W, Cp) f32 acc
    h1 = jnp.maximum(h1 + b1_ref[...], 0.0)

    # ---- h1 stays on-chip: padded into VMEM scratch for conv2 ---------------
    hpad_ref[...] = jnp.zeros(hpad_ref.shape, hpad_ref.dtype)
    hpad_ref[1:H + 1, P:P + W, :] = h1.reshape(H, W, Cp).astype(hpad_ref.dtype)

    p2 = im2col(hpad_ref[...], Cp)                    # (H*W, 9*Cp)
    x_flat = x.reshape(H * W, Cin)
    if has_proj:
        # 1x1 projection shortcut folded into the same matmul (extra K block).
        p2 = jnp.concatenate([p2, x_flat], axis=-1)   # (H*W, 9*Cp + Cin)

    out = jnp.dot(p2, w2_ref[...],
                  preferred_element_type=jnp.float32) + b2_ref[...]
    if not has_proj:
        out = out + x_flat.astype(jnp.float32)        # identity shortcut (Cin == Cp)

    o_ref[...] = jnp.maximum(out, 0.0).reshape(1, H, W, Cp)


# ----------------------------------------------------------------------------
# Wrapper: layout transposes, 2x2 maxpool (cheap, bandwidth-bound -> left in
# XLA), dtype handling and the pallas_call plumbing.
# NOTE: for real ResNet feature maps you would add an H-tile grid axis and
# re-budget the VMEM scratch against v7x's 64 MiB; at these demo shapes a
# per-image block is tiny.
# ----------------------------------------------------------------------------
def basic_block_forward(x_nchw, p, *, stride):
    N, Cin, H0, W0 = x_nchw.shape
    Cp = p["b1"].shape[-1]
    has_proj = bool(p["has_proj"])

    x = jnp.transpose(x_nchw, (0, 2, 3, 1)).astype(jnp.float32)   # NCHW -> NHWC
    if stride == 2:
        # MaxPool2d(2) replaces the stride-2 conv, exactly as in the module
        # (floor behaviour for odd sizes matches PyTorch).
        x = x[:, :(H0 // 2) * 2, :(W0 // 2) * 2, :]
        x = x.reshape(N, H0 // 2, 2, W0 // 2, 2, Cin).max(axis=(2, 4))
    _, H, W, _ = x.shape

    # bf16 MXU operands (weights already have BN scales folded in); f32 biases.
    x_bf = x.astype(jnp.bfloat16)
    w1 = p["w1_folded"].astype(jnp.bfloat16)          # (9*Cin, Cp)
    w2 = p["w2_folded"].astype(jnp.bfloat16)          # (9*Cp [+ Cin], Cp)
    b1 = p["b1"]
    b2 = p["b2"]
    K2 = w2.shape[0]

    flops = 2 * N * H * W * Cp * (9 * Cin + K2)
    bytes_accessed = int(x_bf.size * 2 + w1.size * 2 + w2.size * 2
                         + (b1.size + b2.size) * 4 + N * H * W * Cp * 4)

    kernel = functools.partial(_basic_block_kernel, H=H, W=W,
                               Cin=Cin, Cp=Cp, has_proj=has_proj)

    out = pl.pallas_call(
        kernel,
        grid=(N,),                                    # one image per grid step
        in_specs=[
            pl.BlockSpec((1, H, W, Cin), lambda n: (n, 0, 0, 0)),
            pl.BlockSpec((9 * Cin, Cp), lambda n: (0, 0)),
            pl.BlockSpec((1, Cp), lambda n: (0, 0)),
            pl.BlockSpec((K2, Cp), lambda n: (0, 0)),
            pl.BlockSpec((1, Cp), lambda n: (0, 0)),
        ],
        out_specs=pl.BlockSpec((1, H, W, Cp), lambda n: (n, 0, 0, 0)),
        out_shape=jax.ShapeDtypeStruct((N, H, W, Cp), jnp.float32),
        scratch_shapes=[
            pltpu.VMEM((H + 2, W + 2 * _SUBPAD, Cin), jnp.bfloat16),  # padded x
            pltpu.VMEM((H + 2, W + 2 * _SUBPAD, Cp), jnp.bfloat16),   # padded h1
        ],
        compiler_params=pltpu.CompilerParams(
            dimension_semantics=("parallel",)),       # 2 TCs on v7x; no-op on v5e/v6e
        cost_estimate=pl.CostEstimate(flops=flops, transcendentals=0,
                                      bytes_accessed=bytes_accessed),
    )(x_bf, w1, b1, w2, b2)

    return jnp.transpose(out, (0, 3, 1, 2))           # NHWC -> NCHW


# ----------------------------------------------------------------------------
# Deterministic parameter construction. BN (gamma, beta, mean, var) are folded
# into per-channel (scale, bias); scales are further folded into the conv
# weights ahead of time, so the kernel only adds biases.
# ----------------------------------------------------------------------------
def make_params(key, in_planes, planes, stride):
    ks = jax.random.split(key, 6)

    def bn_fold(k, c):
        kg, kb, km, kv = jax.random.split(k, 4)
        gamma = jax.random.normal(kg, (c,), jnp.float32) * 0.1 + 1.0
        beta = jax.random.normal(kb, (c,), jnp.float32) * 0.1
        mean = jax.random.normal(km, (c,), jnp.float32) * 0.1
        var = jax.random.uniform(kv, (c,), jnp.float32, minval=0.5, maxval=1.5)
        scale = gamma / jnp.sqrt(var + _EPS)
        bias = beta - mean * scale
        return scale, bias

    w1 = jax.random.normal(ks[0], (3, 3, in_planes, planes), jnp.float32) * 0.1
    w2 = jax.random.normal(ks[1], (3, 3, planes, planes), jnp.float32) * 0.1
    s1, b1 = bn_fold(ks[2], planes)
    s2, b2 = bn_fold(ks[3], planes)
    has_proj = (stride != 1) or (in_planes != planes)

    # Fold BN scales into the conv weights (done once, outside the kernel).
    w1_folded = (w1 * s1).reshape(9 * in_planes, planes)
    w2_folded = (w2 * s2).reshape(9 * planes, planes)

    if has_proj:
        ws = jax.random.normal(ks[4], (in_planes, planes), jnp.float32) * 0.1
        ss, bs = bn_fold(ks[5], planes)
        # Shortcut 1x1 conv + its BN folded into the conv2 weight / bias.
        w2_folded = jnp.concatenate([w2_folded, ws * ss], axis=0)
        b2_total = b2 + bs
    else:
        ws = ss = bs = None
        b2_total = b2

    return {
        "w1_hwio": w1, "w2_hwio": w2,
        "s1": s1, "b1_raw": b1, "s2": s2, "b2_raw": b2,
        "ws": ws, "ss": ss, "bs": bs, "has_proj": has_proj,
        "w1_folded": w1_folded, "w2_folded": w2_folded,
        "b1": b1.reshape(1, planes), "b2": b2_total.reshape(1, planes),
    }


# ----------------------------------------------------------------------------
# Pure-JAX f32 reference (correctness check only; kernel uses bf16 operands,
# hence the relaxed tolerance below).
# ----------------------------------------------------------------------------
def reference_forward(x_nchw, p, *, stride):
    x = jnp.transpose(x_nchw, (0, 2, 3, 1)).astype(jnp.float32)
    if stride == 2:
        N, H0, W0, C = x.shape
        x = x[:, :(H0 // 2) * 2, :(W0 // 2) * 2, :]
        x = x.reshape(N, H0 // 2, 2, W0 // 2, 2, C).max(axis=(2, 4))
    dn = ("NHWC", "HWIO", "NHWC")
    h1 = lax.conv_general_dilated(x, p["w1_hwio"], (1, 1), "SAME",
                                  dimension_numbers=dn)
    h1 = jnp.maximum(h1 * p["s1"] + p["b1_raw"], 0.0)
    h2 = lax.conv_general_dilated(h1, p["w2_hwio"], (1, 1), "SAME",
                                  dimension_numbers=dn)
    h2 = h2 * p["s2"] + p["b2_raw"]
    if p["has_proj"]:
        sc = jnp.einsum("nhwc,cd->nhwd", x, p["ws"]) * p["ss"] + p["bs"]
    else:
        sc = x
    out = jnp.maximum(h2 + sc, 0.0)
    return jnp.transpose(out, (0, 3, 1, 2))


if __name__ == "__main__":
    key = jax.random.PRNGKey(0)
    kx, kp1, kp2 = jax.random.split(key, 3)

    # Config 1: downsampling block (stride=2 -> maxpool, projection shortcut)
    in_planes, planes, stride = 4, 8, 2
    x = jax.random.normal(kx, (2, in_planes, 16, 16), jnp.float32)
    params = make_params(kp1, in_planes, planes, stride)
    out = jax.block_until_ready(basic_block_forward(x, params, stride=stride))
    ref = jax.block_until_ready(reference_forward(x, params, stride=stride))
    assert out.shape == (2, planes, 8, 8), out.shape
    assert jnp.allclose(out, ref, rtol=5e-2, atol=5e-2), \
        ("max abs err", float(jnp.max(jnp.abs(out - ref))))

    # Config 2: identity-shortcut block (stride=1, in_planes == planes)
    in_planes2, planes2, stride2 = 8, 8, 1
    x2 = jax.random.normal(kx, (2, in_planes2, 16, 16), jnp.float32)
    params2 = make_params(kp2, in_planes2, planes2, stride2)
    out2 = jax.block_until_ready(basic_block_forward(x2, params2, stride=stride2))
    ref2 = jax.block_until_ready(reference_forward(x2, params2, stride=stride2))
    assert out2.shape == (2, planes2, 16, 16), out2.shape
    assert jnp.allclose(out2, ref2, rtol=5e-2, atol=5e-2), \
        ("max abs err", float(jnp.max(jnp.abs(out2 - ref2))))

    print("KERNEL_OK")
</pallas_src>

<mosaic_0001>
module attributes {stable_mosaic.version = 11 : i64} {
  func.func @_basic_block_kernel(%arg0: i32, %arg1: memref<1x8x8x4xbf16, #tpu.memory_space<vmem>>, %arg2: memref<36x8xbf16, #tpu.memory_space<vmem>>, %arg3: memref<1x8xf32, #tpu.memory_space<vmem>>, %arg4: memref<76x8xbf16, #tpu.memory_space<vmem>>, %arg5: memref<1x8xf32, #tpu.memory_space<vmem>>, %arg6: memref<1x8x8x8xf32, #tpu.memory_space<vmem>>, %arg7: memref<10x40x4xbf16, #tpu.memory_space<vmem>>, %arg8: memref<10x40x8xbf16, #tpu.memory_space<vmem>>) attributes {dimension_semantics = [#tpu.dimension_semantics<parallel>], iteration_bounds = array<i64: 2>, scalar_prefetch = 0 : i64, scratch_operands = 2 : i64, tpu.core_type = #tpu.core_type<tc>, window_params = [{transform_indices = @transform_0, window_bounds = array<i64: 1, 8, 8, 4>}, {pipeline_mode = #tpu.pipeline_mode<synchronous>, transform_indices = @transform_1, window_bounds = array<i64: 36, 8>}, {pipeline_mode = #tpu.pipeline_mode<synchronous>, transform_indices = @transform_2, window_bounds = array<i64: 1, 8>}, {pipeline_mode = #tpu.pipeline_mode<synchronous>, transform_indices = @transform_3, window_bounds = array<i64: 76, 8>}, {pipeline_mode = #tpu.pipeline_mode<synchronous>, transform_indices = @transform_4, window_bounds = array<i64: 1, 8>}, {transform_indices = @transform_5, window_bounds = array<i64: 1, 8, 8, 8>}]} {
    %c0 = arith.constant 0 : index
    %c0_0 = arith.constant 0 : index
    %c0_1 = arith.constant 0 : index
    %c0_2 = arith.constant 0 : index
    %0 = vector.load %arg1[%c0, %c0_0, %c0_1, %c0_2] : memref<1x8x8x4xbf16, #tpu.memory_space<vmem>>, vector<1x8x8x4xbf16>
    %1 = vector.shape_cast %0 : vector<1x8x8x4xbf16> to vector<8x8x4xbf16>
    %cst = arith.constant 0.000000e+00 : bf16
    %2 = vector.broadcast %cst : bf16 to vector<10x40x4xbf16>
    %c0_3 = arith.constant 0 : index
    %c0_4 = arith.constant 0 : index
    %c0_5 = arith.constant 0 : index
    %3 = vector.load %arg7[%c0_3, %c0_4, %c0_5] : memref<10x40x4xbf16, #tpu.memory_space<vmem>>, vector<10x40x4xbf16>
    tpu.vector_store %arg7[%c0_3, %c0_4, %c0_5], %2 {strides = array<i32>} : memref<10x40x4xbf16, #tpu.memory_space<vmem>>, vector<10x40x4xbf16>,
    %c1 = arith.constant 1 : index
    %c16 = arith.constant 16 : index
    %c0_6 = arith.constant 0 : index
    %4 = vector.load %arg7[%c1, %c16, %c0_6] : memref<10x40x4xbf16, #tpu.memory_space<vmem>>, vector<8x8x4xbf16>
    tpu.vector_store %arg7[%c1, %c16, %c0_6], %1 {strides = array<i32>} : memref<10x40x4xbf16, #tpu.memory_space<vmem>>, vector<8x8x4xbf16>,
    %c0_7 = arith.constant 0 : index
    %c0_8 = arith.constant 0 : index
    %c0_9 = arith.constant 0 : index
    %5 = vector.load %arg7[%c0_7, %c0_8, %c0_9] : memref<10x40x4xbf16, #tpu.memory_space<vmem>>, vector<10x40x4xbf16>
    %6 = vector.extract_strided_slice %5 {offsets = [0, 15, 0], sizes = [8, 8, 4], strides = [1, 1, 1]} : vector<10x40x4xbf16> to vector<8x8x4xbf16>
    %7 = vector.shape_cast %6 : vector<8x8x4xbf16> to vector<64x4xbf16>
    %8 = vector.extract_strided_slice %5 {offsets = [0, 16, 0], sizes = [8, 8, 4], strides = [1, 1, 1]} : vector<10x40x4xbf16> to vector<8x8x4xbf16>
    %9 = vector.shape_cast %8 : vector<8x8x4xbf16> to vector<64x4xbf16>
    %10 = vector.extract_strided_slice %5 {offsets = [0, 17, 0], sizes = [8, 8, 4], strides = [1, 1, 1]} : vector<10x40x4xbf16> to vector<8x8x4xbf16>
    %11 = vector.shape_cast %10 : vector<8x8x4xbf16> to vector<64x4xbf16>
    %12 = vector.extract_strided_slice %5 {offsets = [1, 15, 0], sizes = [8, 8, 4], strides = [1, 1, 1]} : vector<10x40x4xbf16> to vector<8x8x4xbf16>
    %13 = vector.shape_cast %12 : vector<8x8x4xbf16> to vector<64x4xbf16>
    %14 = vector.extract_strided_slice %5 {offsets = [1, 16, 0], sizes = [8, 8, 4], strides = [1, 1, 1]} : vector<10x40x4xbf16> to vector<8x8x4xbf16>
    %15 = vector.shape_cast %14 : vector<8x8x4xbf16> to vector<64x4xbf16>
    %16 = vector.extract_strided_slice %5 {offsets = [1, 17, 0], sizes = [8, 8, 4], strides = [1, 1, 1]} : vector<10x40x4xbf16> to vector<8x8x4xbf16>
    %17 = vector.shape_cast %16 : vector<8x8x4xbf16> to vector<64x4xbf16>
    %18 = vector.extract_strided_slice %5 {offsets = [2, 15, 0], sizes = [8, 8, 4], strides = [1, 1, 1]} : vector<10x40x4xbf16> to vector<8x8x4xbf16>
    %19 = vector.shape_cast %18 : vector<8x8x4xbf16> to vector<64x4xbf16>
    %20 = vector.extract_strided_slice %5 {offsets = [2, 16, 0], sizes = [8, 8, 4], strides = [1, 1, 1]} : vector<10x40x4xbf16> to vector<8x8x4xbf16>
    %21 = vector.shape_cast %20 : vector<8x8x4xbf16> to vector<64x4xbf16>
    %22 = vector.extract_strided_slice %5 {offsets = [2, 17, 0], sizes = [8, 8, 4], strides = [1, 1, 1]} : vector<10x40x4xbf16> to vector<8x8x4xbf16>
    %23 = vector.shape_cast %22 : vector<8x8x4xbf16> to vector<64x4xbf16>
    %24 = tpu.concatenate %7, %9, %11, %13, %15, %17, %19, %21, %23 in 1 : vector<64x4xbf16>, vector<64x4xbf16>, vector<64x4xbf16>, vector<64x4xbf16>, vector<64x4xbf16>, vector<64x4xbf16>, vector<64x4xbf16>, vector<64x4xbf16>, vector<64x4xbf16> -> vector<64x36xbf16>
    %c0_10 = arith.constant 0 : index
    %c0_11 = arith.constant 0 : index
    %25 = vector.load %arg2[%c0_10, %c0_11] : memref<36x8xbf16, #tpu.memory_space<vmem>>, vector<36x8xbf16>
    %cst_12 = arith.constant dense<0.000000e+00> : vector<64x8xf32>
    %26 = tpu.matmul %24, %25, %cst_12 {dimension_numbers = #tpu.dot_dimension_numbers<[1], [0], [0], [1], [0, 0, 1, 1], [], []>} : vector<64x36xbf16>, vector<36x8xbf16>, vector<64x8xf32> -> vector<64x8xf32>
    %c0_13 = arith.constant 0 : index
    %c0_14 = arith.constant 0 : index
    %27 = vector.load %arg3[%c0_13, %c0_14] : memref<1x8xf32, #tpu.memory_space<vmem>>, vector<1x8xf32>
    %28 = vector.broadcast %27 : vector<1x8xf32> to vector<64x8xf32>
    %29 = arith.addf %26, %28 : vector<64x8xf32>
    %cst_15 = arith.constant 0.000000e+00 : f32
    %30 = vector.broadcast %cst_15 : f32 to vector<64x8xf32>
    %31 = arith.maximumf %29, %30 : vector<64x8xf32>
    %cst_16 = arith.constant 0.000000e+00 : bf16
    %32 = vector.broadcast %cst_16 : bf16 to vector<10x40x8xbf16>
    %c0_17 = arith.constant 0 : index
    %c0_18 = arith.constant 0 : index
    %c0_19 = arith.constant 0 : index
    %33 = vector.load %arg8[%c0_17, %c0_18, %c0_19] : memref<10x40x8xbf16, #tpu.memory_space<vmem>>, vector<10x40x8xbf16>
    tpu.vector_store %arg8[%c0_17, %c0_18, %c0_19], %32 {strides = array<i32>} : memref<10x40x8xbf16, #tpu.memory_space<vmem>>, vector<10x40x8xbf16>,
    %34 = vector.shape_cast %31 : vector<64x8xf32> to vector<8x8x8xf32>
    %35 = arith.truncf %34 : vector<8x8x8xf32> to vector<8x8x8xbf16>
    %c1_20 = arith.constant 1 : index
    %c16_21 = arith.constant 16 : index
    %c0_22 = arith.constant 0 : index
    %36 = vector.load %arg8[%c1_20, %c16_21, %c0_22] : memref<10x40x8xbf16, #tpu.memory_space<vmem>>, vector<8x8x8xbf16>
    tpu.vector_store %arg8[%c1_20, %c16_21, %c0_22], %35 {strides = array<i32>} : memref<10x40x8xbf16, #tpu.memory_space<vmem>>, vector<8x8x8xbf16>,
    %c0_23 = arith.constant 0 : index
    %c0_24 = arith.constant 0 : index
    %c0_25 = arith.constant 0 : index
    %37 = vector.load %arg8[%c0_23, %c0_24, %c0_25] : memref<10x40x8xbf16, #tpu.memory_space<vmem>>, vector<10x40x8xbf16>
    %38 = vector.extract_strided_slice %37 {offsets = [0, 15, 0], sizes = [8, 8, 8], strides = [1, 1, 1]} : vector<10x40x8xbf16> to vector<8x8x8xbf16>
    %39 = vector.shape_cast %38 : vector<8x8x8xbf16> to vector<64x8xbf16>
    %40 = vector.extract_strided_slice %37 {offsets = [0, 16, 0], sizes = [8, 8, 8], strides = [1, 1, 1]} : vector<10x40x8xbf16> to vector<8x8x8xbf16>
    %41 = vector.shape_cast %40 : vector<8x8x8xbf16> to vector<64x8xbf16>
    %42 = vector.extract_strided_slice %37 {offsets = [0, 17, 0], sizes = [8, 8, 8], strides = [1, 1, 1]} : vector<10x40x8xbf16> to vector<8x8x8xbf16>
    %43 = vector.shape_cast %42 : vector<8x8x8xbf16> to vector<64x8xbf16>
    %44 = vector.extract_strided_slice %37 {offsets = [1, 15, 0], sizes = [8, 8, 8], strides = [1, 1, 1]} : vector<10x40x8xbf16> to vector<8x8x8xbf16>
    %45 = vector.shape_cast %44 : vector<8x8x8xbf16> to vector<64x8xbf16>
    %46 = vector.extract_strided_slice %37 {offsets = [1, 16, 0], sizes = [8, 8, 8], strides = [1, 1, 1]} : vector<10x40x8xbf16> to vector<8x8x8xbf16>
    %47 = vector.shape_cast %46 : vector<8x8x8xbf16> to vector<64x8xbf16>
    %48 = vector.extract_strided_slice %37 {offsets = [1, 17, 0], sizes = [8, 8, 8], strides = [1, 1, 1]} : vector<10x40x8xbf16> to vector<8x8x8xbf16>
    %49 = vector.shape_cast %48 : vector<8x8x8xbf16> to vector<64x8xbf16>
    %50 = vector.extract_strided_slice %37 {offsets = [2, 15, 0], sizes = [8, 8, 8], strides = [1, 1, 1]} : vector<10x40x8xbf16> to vector<8x8x8xbf16>
    %51 = vector.shape_cast %50 : vector<8x8x8xbf16> to vector<64x8xbf16>
    %52 = vector.extract_strided_slice %37 {offsets = [2, 16, 0], sizes = [8, 8, 8], strides = [1, 1, 1]} : vector<10x40x8xbf16> to vector<8x8x8xbf16>
    %53 = vector.shape_cast %52 : vector<8x8x8xbf16> to vector<64x8xbf16>
    %54 = vector.extract_strided_slice %37 {offsets = [2, 17, 0], sizes = [8, 8, 8], strides = [1, 1, 1]} : vector<10x40x8xbf16> to vector<8x8x8xbf16>
    %55 = vector.shape_cast %54 : vector<8x8x8xbf16> to vector<64x8xbf16>
    %56 = tpu.concatenate %39, %41, %43, %45, %47, %49, %51, %53, %55 in 1 : vector<64x8xbf16>, vector<64x8xbf16>, vector<64x8xbf16>, vector<64x8xbf16>, vector<64x8xbf16>, vector<64x8xbf16>, vector<64x8xbf16>, vector<64x8xbf16>, vector<64x8xbf16> -> vector<64x72xbf16>
    %57 = vector.shape_cast %1 : vector<8x8x4xbf16> to vector<64x4xbf16>
    %58 = tpu.concatenate %56, %57 in 1 : vector<64x72xbf16>, vector<64x4xbf16> -> vector<64x76xbf16>
    %c0_26 = arith.constant 0 : index
    %c0_27 = arith.constant 0 : index
    %59 = vector.load %arg4[%c0_26, %c0_27] : memref<76x8xbf16, #tpu.memory_space<vmem>>, vector<76x8xbf16>
    %cst_28 = arith.constant dense<0.000000e+00> : vector<64x8xf32>
    %60 = tpu.matmul %58, %59, %cst_28 {dimension_numbers = #tpu.dot_dimension_numbers<[1], [0], [0], [1], [0, 0, 1, 1], [], []>} : vector<64x76xbf16>, vector<76x8xbf16>, vector<64x8xf32> -> vector<64x8xf32>
    %c0_29 = arith.constant 0 : index
    %c0_30 = arith.constant 0 : index
    %61 = vector.load %arg5[%c0_29, %c0_30] : memref<1x8xf32, #tpu.memory_space<vmem>>, vector<1x8xf32>
    %62 = vector.broadcast %61 : vector<1x8xf32> to vector<64x8xf32>
    %63 = arith.addf %60, %62 : vector<64x8xf32>
    %cst_31 = arith.constant 0.000000e+00 : f32
    %64 = vector.broadcast %cst_31 : f32 to vector<64x8xf32>
    %65 = arith.maximumf %63, %64 : vector<64x8xf32>
    %66 = vector.shape_cast %65 : vector<64x8xf32> to vector<1x8x8x8xf32>
    %c0_32 = arith.constant 0 : index
    %c0_33 = arith.constant 0 : index
    %c0_34 = arith.constant 0 : index
    %c0_35 = arith.constant 0 : index
    %67 = vector.load %arg6[%c0_32, %c0_33, %c0_34, %c0_35] : memref<1x8x8x8xf32, #tpu.memory_space<vmem>>, vector<1x8x8x8xf32>
    tpu.vector_store %arg6[%c0_32, %c0_33, %c0_34, %c0_35], %66 {strides = array<i32>} : memref<1x8x8x8xf32, #tpu.memory_space<vmem>>, vector<1x8x8x8xf32>,
    return
  }
  func.func @transform_0(%arg0: i32) -> (i32, i32, i32, i32) {
    %c0_i32 = arith.constant 0 : i32
    %c0_i32_0 = arith.constant 0 : i32
    %c0_i32_1 = arith.constant 0 : i32
    %c0_i32_2 = arith.constant 0 : i32
    return %arg0, %c0_i32, %c0_i32_0, %c0_i32_1 : i32, i32, i32, i32
  }
  func.func @transform_1(%arg0: i32) -> (i32, i32) {
    %c0_i32 = arith.constant 0 : i32
    %c0_i32_0 = arith.constant 0 : i32
    %c0_i32_1 = arith.constant 0 : i32
    return %c0_i32, %c0_i32_0 : i32, i32
  }
  func.func @transform_2(%arg0: i32) -> (i32, i32) {
    %c0_i32 = arith.constant 0 : i32
    %c0_i32_0 = arith.constant 0 : i32
    %c0_i32_1 = arith.constant 0 : i32
    return %c0_i32, %c0_i32_0 : i32, i32
  }
  func.func @transform_3(%arg0: i32) -> (i32, i32) {
    %c0_i32 = arith.constant 0 : i32
    %c0_i32_0 = arith.constant 0 : i32
    %c0_i32_1 = arith.constant 0 : i32
    return %c0_i32, %c0_i32_0 : i32, i32
  }
  func.func @transform_4(%arg0: i32) -> (i32, i32) {
    %c0_i32 = arith.constant 0 : i32
    %c0_i32_0 = arith.constant 0 : i32
    %c0_i32_1 = arith.constant 0 : i32
    return %c0_i32, %c0_i32_0 : i32, i32
  }
  func.func @transform_5(%arg0: i32) -> (i32, i32, i32, i32) {
    %c0_i32 = arith.constant 0 : i32
    %c0_i32_0 = arith.constant 0 : i32
    %c0_i32_1 = arith.constant 0 : i32
    %c0_i32_2 = arith.constant 0 : i32
    return %arg0, %c0_i32, %c0_i32_0, %c0_i32_1 : i32, i32, i32, i32
  }
}

</mosaic_0001>

<llo_original>
// kernel: tpu_custom_call.1
$region0: #{tpu_custom_call.1}
  #allocation0 [shape = 'u32[]', space=smem, size = 0x4, offset = 0x4, fixed_abs, tag = 'smem constant byte address 0x4 - core index']
  #allocation1 [shape = 'u32[144,128]{1,0:T(1,128)}', space=vmem, size = 0x12000, scoped, tag = 'internal scratch']
  #allocation2 [shape = 'bf16[10,40,4]{2,1,0:T(8,128)(2,1)}', space=vmem, size = 0x19000, scoped, tag = 'scratch operand']
  #allocation3 [shape = 'bf16[10,40,8]{2,1,0:T(8,128)(2,1)}', space=vmem, size = 0x19000, scoped, tag = 'scratch operand']
  %s0 = inlined_call_operand.vmem [shape: bf16[2,8,8,4], index: 0, kind: input, shape index: {}]
  %s1 = inlined_call_operand.vmem [shape: bf16[36,8], index: 1, kind: input, shape index: {}]
  %s2 = inlined_call_operand.vmem [shape: f32[1,8], index: 2, kind: input, shape index: {}]
  %s3 = inlined_call_operand.vmem [shape: bf16[76,8], index: 3, kind: input, shape index: {}]
  %s4 = inlined_call_operand.vmem [shape: f32[1,8], index: 4, kind: input, shape index: {}]
  %s5 = inlined_call_operand.hbm [shape: f32[2,8,8,8], index: 5, kind: output, shape index: {}]
  %s6 = sld [smem:[#allocation0]]
  $region53: #{tpu_custom_call.1} parent=0
    _
  %s8 = ssub.s32 1, %s6
  %s9 = scalar_select 0, %s8, %s6
  $region1: #{tpu_custom_call.1} parent=0
    #allocation4 [shape = 'u8[65536]{0}', space=vmem, size = 0x10000, scoped, tag = 'output window, operand 0']
    #allocation5 [shape = 's32[2]{0}', space=sflag, size = 0x8, scoped, tag = 'scoped memory for tpu_custom_call.1']
    %10 = vsyncpa [#allocation5], 0
    %s11 = scalar_lea.sflag [#allocation5], 1
    %12 = vsyncpa %s11, 0
    loop: start=0, step=1, limit=4
    $region2: #{tpu_custom_call.1} parent=1 // loop_pre_header
      _
    $region3: #{tpu_custom_call.1} parent=1 // loop_header
      %s14 = sphi 0, %s18
      %p15 = scmp.ge.s32.totalorder %s14, 4
      %s24 = sphi 0, %s26
      %s27 = sphi 0, %s24
      %s28 = sphi 0, %s27
      %s44 = sphi 0, %s28
      %s48 = sphi 0, %s48
      %s50 = sphi 0, %s48
      %s51 = sphi 0, %s50
      %s65 = sphi 0, %s51
      %s69 = sphi 0, %s69
      %s71 = sphi 0, %s69
      %s72 = sphi 0, %s71
      %s86 = sphi 0, %s72
      %s90 = sphi 0, %s90
      %s92 = sphi 0, %s90
      %s93 = sphi 0, %s92
      %s107 = sphi 0, %s93
      %s111 = sphi 0, %s111
      %s113 = sphi 0, %s111
      %s114 = sphi 0, %s113
      %s128 = sphi 0, %s114
      %s134 = sphi 0, %s136
      %s137 = sphi 0, %s134
      %s138 = sphi 0, %s137
      %s154 = sphi 0, %s138
    $region4: #{tpu_custom_call.1} parent=1 // loop_header_branch
      %17 = sbr.rel (%p15) target = $region8
    $region5: #{tpu_custom_call.1} parent=1 // loop_body
      %s19 = ssub.s32 %s14, 1
      %s20 = ssub.s32 %s14, 2
      %s21 = sadd.s32 %s14, 1
      %s22 = ssub.s32 %s14, %s21
      %p23 = scmp.eq.s32.totalorder %s22, 0
      %s25 = sadd.s32 %s24, 1
      %s26 = scalar_select %p23, %s24, %s25
      %p29 = pneg %p23
      %p30 = scmp.eq.s32.totalorder %s14, 1
      %p31 = por %p29, %p30
      %p32 = scmp.ne.s32.totalorder %s24, %s27
      %p33 = scmp.eq.s32.totalorder %s14, 0
      %p34 = por %p32, %p33
      %p35 = scmp.ne.s32.totalorder %s24, %s27
      %p36 = scmp.eq.s32.totalorder %s19, 1
      %p37 = por %p35, %p36
      %p38 = scmp.ne.s32.totalorder %s27, %s28
      %p39 = scmp.eq.s32.totalorder %s19, 0
      %p40 = por %p38, %p39
      %p41 = scmp.ne.s32.totalorder %s27, %s28
      %p42 = scmp.eq.s32.totalorder %s20, 1
      %p43 = por %p41, %p42
      %p45 = scmp.ne.s32.totalorder %s28, %s44
      %p46 = scmp.eq.s32.totalorder %s20, 0
      %p47 = por %p45, %p46
      %s49 = sadd.s32 %s48, 1
      %p52 = scmp.eq.s32.totalorder %s14, 1
      %p53 = scmp.ne.s32.totalorder %s48, %s50
      %p54 = scmp.eq.s32.totalorder %s14, 0
      %p55 = por %p53, %p54
      %p56 = scmp.ne.s32.totalorder %s48, %s50
      %p57 = scmp.eq.s32.totalorder %s19, 1
      %p58 = por %p56, %p57
      %p59 = scmp.ne.s32.totalorder %s50, %s51
      %p60 = scmp.eq.s32.totalorder %s19, 0
      %p61 = por %p59, %p60
      %p62 = scmp.ne.s32.totalorder %s50, %s51
      %p63 = scmp.eq.s32.totalorder %s20, 1
      %p64 = por %p62, %p63
      %p66 = scmp.ne.s32.totalorder %s51, %s65
      %p67 = scmp.eq.s32.totalorder %s20, 0
      %p68 = por %p66, %p67
      %s70 = sadd.s32 %s69, 1
      %p73 = scmp.eq.s32.totalorder %s14, 1
      %p74 = scmp.ne.s32.totalorder %s69, %s71
      %p75 = scmp.eq.s32.totalorder %s14, 0
      %p76 = por %p74, %p75
      %p77 = scmp.ne.s32.totalorder %s69, %s71
      %p78 = scmp.eq.s32.totalorder %s19, 1
      %p79 = por %p77, %p78
      %p80 = scmp.ne.s32.totalorder %s71, %s72
      %p81 = scmp.eq.s32.totalorder %s19, 0
      %p82 = por %p80, %p81
      %p83 = scmp.ne.s32.totalorder %s71, %s72
      %p84 = scmp.eq.s32.totalorder %s20, 1
      %p85 = por %p83, %p84
      %p87 = scmp.ne.s32.totalorder %s72, %s86
      %p88 = scmp.eq.s32.totalorder %s20, 0
      %p89 = por %p87, %p88
      %s91 = sadd.s32 %s90, 1
      %p94 = scmp.eq.s32.totalorder %s14, 1
      %p95 = scmp.ne.s32.totalorder %s90, %s92
      %p96 = scmp.eq.s32.totalorder %s14, 0
      %p97 = por %p95, %p96
      %p98 = scmp.ne.s32.totalorder %s90, %s92
      %p99 = scmp.eq.s32.totalorder %s19, 1
      %p100 = por %p98, %p99
      %p101 = scmp.ne.s32.totalorder %s92, %s93
      %p102 = scmp.eq.s32.totalorder %s19, 0
      %p103 = por %p101, %p102
      %p104 = scmp.ne.s32.totalorder %s92, %s93
      %p105 = scmp.eq.s32.totalorder %s20, 1
      %p106 = por %p104, %p105
      %p108 = scmp.ne.s32.totalorder %s93, %s107
      %p109 = scmp.eq.s32.totalorder %s20, 0
      %p110 = por %p108, %p109
      %s112 = sadd.s32 %s111, 1
      %p115 = scmp.eq.s32.totalorder %s14, 1
      %p116 = scmp.ne.s32.totalorder %s111, %s113
      %p117 = scmp.eq.s32.totalorder %s14, 0
      %p118 = por %p116, %p117
      %p119 = scmp.ne.s32.totalorder %s111, %s113
      %p120 = scmp.eq.s32.totalorder %s19, 1
      %p121 = por %p119, %p120
      %p122 = scmp.ne.s32.totalorder %s113, %s114
      %p123 = scmp.eq.s32.totalorder %s19, 0
      %p124 = por %p122, %p123
      %p125 = scmp.ne.s32.totalorder %s113, %s114
      %p126 = scmp.eq.s32.totalorder %s20, 1
      %p127 = por %p125, %p126
      %p129 = scmp.ne.s32.totalorder %s114, %s128
      %p130 = scmp.eq.s32.totalorder %s20, 0
      %p131 = por %p129, %p130
      %s132 = ssub.s32 %s14, %s21
      %p133 = scmp.eq.s32.totalorder %s132, 0
      %s135 = sadd.s32 %s134, 1
      %s136 = scalar_select %p133, %s134, %s135
      %p139 = pneg %p133
      %p140 = scmp.eq.s32.totalorder %s14, 1
      %p141 = por %p139, %p140
      %p142 = scmp.ne.s32.totalorder %s134, %s137
      %p143 = scmp.eq.s32.totalorder %s14, 0
      %p144 = por %p142, %p143
      %p145 = scmp.ne.s32.totalorder %s134, %s137
      %p146 = scmp.eq.s32.totalorder %s19, 1
      %p147 = por %p145, %p146
      %p148 = scmp.ne.s32.totalorder %s137, %s138
      %p149 = scmp.eq.s32.totalorder %s19, 0
      %p150 = por %p148, %p149
      %p151 = scmp.ne.s32.totalorder %s137, %s138
      %p152 = scmp.eq.s32.totalorder %s20, 1
      %p153 = por %p151, %p152
      %p155 = scmp.ne.s32.totalorder %s138, %s154
      %p156 = scmp.eq.s32.totalorder %s20, 0
      %p157 = por %p155, %p156
      %p158 = scmp.le.s32.totalorder 1, %s14
      %p159 = scmp.lt.s32.totalorder %s14, 3
      %p160 = pnand %p158, %p159
      %p161 = pneg %p160
      // Predicated region
      $region9: #{tpu_custom_call.1} parent=5 // pred_check
        _
      $region10: #{tpu_custom_call.1} parent=5 // pred_check_branch
        %163 = sbr.rel (%p160) target = $region12
      $region11: #{tpu_custom_call.1} parent=5 // pred_region
        %s164 = ssub.s32 %s14, 1
        // Predicated region
        $region13: #{tpu_custom_call.1} parent=11 // pred_check
          %p165 = pneg %p61
        $region14: #{tpu_custom_call.1} parent=11 // pred_check_branch
          %167 = sbr.rel (%p165) target = $region16
        $region15: #{tpu_custom_call.1} parent=11 // pred_region
          _
        $region16: #{tpu_custom_call.1} parent=11 // pred_fallthru
          _
        // Predicated region
        $region17: #{tpu_custom_call.1} parent=11 // pred_check
          %p168 = pneg %p82
        $region18: #{tpu_custom_call.1} parent=11 // pred_check_branch
          %170 = sbr.rel (%p168) target = $region20
        $region19: #{tpu_custom_call.1} parent=11 // pred_region
          _
        $region20: #{tpu_custom_call.1} parent=11 // pred_fallthru
          _
        // Predicated region
        $region21: #{tpu_custom_call.1} parent=11 // pred_check
          %p171 = pneg %p103
        $region22: #{tpu_custom_call.1} parent=11 // pred_check_branch
          %173 = sbr.rel (%p171) target = $region24
        $region23: #{tpu_custom_call.1} parent=11 // pred_region
          _
        $region24: #{tpu_custom_call.1} parent=11 // pred_fallthru
          _
        // Predicated region
        $region25: #{tpu_custom_call.1} parent=11 // pred_check
          %p174 = pneg %p124
        $region26: #{tpu_custom_call.1} parent=11 // pred_check_branch
          %176 = sbr.rel (%p174) target = $region28
        $region27: #{tpu_custom_call.1} parent=11 // pred_region
          _
        $region28: #{tpu_custom_call.1} parent=11 // pred_fallthru
          _
      $region12: #{tpu_custom_call.1} parent=5 // pred_fallthru
        _
      %p177 = scmp.lt.s32.totalorder %s14, 2
      // Predicated region
      $region29: #{tpu_custom_call.1} parent=5 // pred_check
        %p178 = pneg %p177
      $region30: #{tpu_custom_call.1} parent=5 // pred_check_branch
        %180 = sbr.rel (%p178) target = $region32
      $region31: #{tpu_custom_call.1} parent=5 // pred_region
        // Predicated region
        $region33: #{tpu_custom_call.1} parent=31 // pred_check
          %p181 = pneg %p34
        $region34: #{tpu_custom_call.1} parent=31 // pred_check_branch
          %183 = sbr.rel (%p181) target = $region36
        $region35: #{tpu_custom_call.1} parent=31 // pred_region
          %p184 = scmp.lt.s32.totalorder %s14, 1
          %s185 = scalar_select %p184, %s14, 1
          %s186 = smul.addr %s185, 8
          %s187 = smul.addr %s186, 4
          %s188 = scalar_lea.vmem %s0, %s187
        $region36: #{tpu_custom_call.1} parent=31 // pred_fallthru
          _
      $region32: #{tpu_custom_call.1} parent=5 // pred_fallthru
        _
      %p189 = scmp.le.s32.totalorder 1, %s14
      %p190 = scmp.lt.s32.totalorder %s14, 3
      %p191 = pnand %p189, %p190
      %p192 = pneg %p191
      // Predicated region
      $region37: #{tpu_custom_call.1} parent=5 // pred_check
        _
      $region38: #{tpu_custom_call.1} parent=5 // pred_check_branch
        %194 = sbr.rel (%p191) target = $region40
      $region39: #{tpu_custom_call.1} parent=5 // pred_region
        %s195 = ssub.s32 %s14, 1
        %p196 = scmp.lt.s32.totalorder %s19, 1
        %s197 = scalar_select %p196, %s19, 1
        %s198 = smul.addr %s197, 8
        %s199 = smul.addr %s198, 4
        %s200 = scalar_lea.vmem %s0, %s199
        %p201 = pneg %p40
        %p202 = pneg %p37
        %p203 = pneg %p61
        %p204 = pneg %p58
        %p205 = pneg %p82
        %p206 = pneg %p79
        %p207 = pneg %p103
        %p208 = pneg %p100
        %p209 = pneg %p124
        %p210 = pneg %p121
        %p211 = pneg %p150
        %p212 = pneg %p147
        %s213 = sand.u32 %s137, 1
        %s214 = scalar_lea.sflag [#allocation5], %s213
        %s215 = sand.u32 %s137, 1
        %s216 = smul.addr %s215, 64
        %s217 = scalar_lea.vmem [#allocation4], %s216
        %p218 = scmp.lt.s32.totalorder %s19, 1
        %s219 = scalar_select %p218, %s19, 1
        %s220 = smul.addr %s219, 8
        %s221 = smul.addr %s220, 4
        %s222 = scalar_lea.vmem %s0, %s221
        %v224 = vld [vmem:[%s222] sm:$0xf]
        %v225 = vld [vmem:[%s222 + $0x4] sm:$0xf]
        %v226 = vld [vmem:[%s222 + $0x8] sm:$0xf]
        %v227 = vld [vmem:[%s222 + $0xc] sm:$0xf]
        %v228 = vld [vmem:[%s222 + $0x10] sm:$0xf]
        %v229 = vld [vmem:[%s222 + $0x14] sm:$0xf]
        %v230 = vld [vmem:[%s222 + $0x18] sm:$0xf]
        %v231 = vld [vmem:[%s222 + $0x1c] sm:$0xf]
        %vm232 = vcmask 27648
        %233 = vst.msk [vmem:[#allocation2] sm:$0xf] %vm232, 0
        %234 = vst.msk [vmem:[#allocation2 + $0x4] sm:$0xf] %vm232, 0
        %235 = vst.msk [vmem:[#allocation2 + $0x8] sm:$0xf] %vm232, 0
        %236 = vst.msk [vmem:[#allocation2 + $0xc] sm:$0xf] %vm232, 0
        %237 = vst.msk [vmem:[#allocation2 + $0x10] sm:$0xf] %vm232, 0
        %238 = vst.msk [vmem:[#allocation2 + $0x14] sm:$0xf] %vm232, 0
        %239 = vst.msk [vmem:[#allocation2 + $0x18] sm:$0xf] %vm232, 0
        %240 = vst.msk [vmem:[#allocation2 + $0x1c] sm:$0xf] %vm232, 0
        %241 = vst.msk [vmem:[#allocation2 + $0x20] sm:$0xf] %vm232, 0
        %242 = vst.msk [vmem:[#allocation2 + $0x24] sm:$0xf] %vm232, 0
        %243 = vst.msk [vmem:[#allocation2 + $0x28] sm:$0xf] %vm232, 0
        %244 = vst.msk [vmem:[#allocation2 + $0x2c] sm:$0xf] %vm232, 0
        %245 = vst.msk [vmem:[#allocation2 + $0x30] sm:$0xf] %vm232, 0
        %246 = vst.msk [vmem:[#allocation2 + $0x34] sm:$0xf] %vm232, 0
        %247 = vst.msk [vmem:[#allocation2 + $0x38] sm:$0xf] %vm232, 0
        %248 = vst.msk [vmem:[#allocation2 + $0x3c] sm:$0xf] %vm232, 0
        %249 = vst.msk [vmem:[#allocation2 + $0x40] sm:$0xf] %vm232, 0
        %250 = vst.msk [vmem:[#allocation2 + $0x44] sm:$0xf] %vm232, 0
        %251 = vst.msk [vmem:[#allocation2 + $0x48] sm:$0xf] %vm232, 0
        %252 = vst.msk [vmem:[#allocation2 + $0x4c] sm:$0xf] %vm232, 0
        %253 = vst.msk [vmem:[#allocation2 + $0x50] sm:$0xf] %vm232, 0
        %254 = vst.msk [vmem:[#allocation2 + $0x54] sm:$0xf] %vm232, 0
        %255 = vst.msk [vmem:[#allocation2 + $0x58] sm:$0xf] %vm232, 0
        %256 = vst.msk [vmem:[#allocation2 + $0x5c] sm:$0xf] %vm232, 0
        %257 = vst.msk [vmem:[#allocation2 + $0x60] sm:$0xf] %vm232, 0
        %258 = vst.msk [vmem:[#allocation2 + $0x64] sm:$0xf] %vm232, 0
        %259 = vst.msk [vmem:[#allocation2 + $0x68] sm:$0xf] %vm232, 0
        %260 = vst.msk [vmem:[#allocation2 + $0x6c] sm:$0xf] %vm232, 0
        %261 = vst.msk [vmem:[#allocation2 + $0x70] sm:$0xf] %vm232, 0
        %262 = vst.msk [vmem:[#allocation2 + $0x74] sm:$0xf] %vm232, 0
        %263 = vst.msk [vmem:[#allocation2 + $0x78] sm:$0xf] %vm232, 0
        %264 = vst.msk [vmem:[#allocation2 + $0x7c] sm:$0xf] %vm232, 0
        %265 = vst.msk [vmem:[#allocation2 + $0x80] sm:$0xf] %vm232, 0
        %266 = vst.msk [vmem:[#allocation2 + $0x84] sm:$0xf] %vm232, 0
        %267 = vst.msk [vmem:[#allocation2 + $0x88] sm:$0xf] %vm232, 0
        %268 = vst.msk [vmem:[#allocation2 + $0x8c] sm:$0xf] %vm232, 0
        %269 = vst.msk [vmem:[#allocation2 + $0x90] sm:$0xf] %vm232, 0
        %270 = vst.msk [vmem:[#allocation2 + $0x94] sm:$0xf] %vm232, 0
        %271 = vst.msk [vmem:[#allocation2 + $0x98] sm:$0xf] %vm232, 0
        %272 = vst.msk [vmem:[#allocation2 + $0x9c] sm:$0xf] %vm232, 0
        %273 = vst.msk [vmem:[#allocation2 + $0xa0] sm:$0xf] %vm232, 0
        %274 = vst.msk [vmem:[#allocation2 + $0xa4] sm:$0xf] %vm232, 0
        %275 = vst.msk [vmem:[#allocation2 + $0xa8] sm:$0xf] %vm232, 0
        %276 = vst.msk [vmem:[#allocation2 + $0xac] sm:$0xf] %vm232, 0
        %277 = vst.msk [vmem:[#allocation2 + $0xb0] sm:$0xf] %vm232, 0
        %278 = vst.msk [vmem:[#allocation2 + $0xb4] sm:$0xf] %vm232, 0
        %279 = vst.msk [vmem:[#allocation2 + $0xb8] sm:$0xf] %vm232, 0
        %280 = vst.msk [vmem:[#allocation2 + $0xbc] sm:$0xf] %vm232, 0
        %281 = vst.msk [vmem:[#allocation2 + $0xc0] sm:$0xf] %vm232, 0
        %282 = vst.msk [vmem:[#allocation2 + $0xc4] sm:$0xf] %vm232, 0
        %s283 = scalar_lea.vmem [#allocation2], 20
        %284 = vst.msk [vmem:[%s283 + $0x8] sm:$0xf] %vm232, %v224
        %285 = vst.msk [vmem:[%s283 + $0x1c] sm:$0xf] %vm232, %v225
        %286 = vst.msk [vmem:[%s283 + $0x30] sm:$0xf] %vm232, %v226
        %287 = vst.msk [vmem:[%s283 + $0x44] sm:$0xf] %vm232, %v227
        %288 = vst.msk [vmem:[%s283 + $0x58] sm:$0xf] %vm232, %v228
        %289 = vst.msk [vmem:[%s283 + $0x6c] sm:$0xf] %vm232, %v229
        %290 = vst.msk [vmem:[%s283 + $0x80] sm:$0xf] %vm232, %v230
        %291 = vst.msk [vmem:[%s283 + $0x94] sm:$0xf] %vm232, %v231
        %v292 = vld [vmem:[#allocation2 + $0x4] sm:$0xf]
        %v293 = vld [vmem:[#allocation2 + $0x8] sm:$0xf]
        %v294 = vld [vmem:[#allocation2 + $0xc] sm:$0xf]
        %v295 = vld [vmem:[#allocation2 + $0x18] sm:$0xf]
        %v296 = vld [vmem:[#allocation2 + $0x1c] sm:$0xf]
        %v297 = vld [vmem:[#allocation2 + $0x20] sm:$0xf]
        %v298 = vld [vmem:[#allocation2 + $0x2c] sm:$0xf]
        %v299 = vld [vmem:[#allocation2 + $0x30] sm:$0xf]
        %v300 = vld [vmem:[#allocation2 + $0x34] sm:$0xf]
        %v301 = vld [vmem:[#allocation2 + $0x40] sm:$0xf]
        %v302 = vld [vmem:[#allocation2 + $0x44] sm:$0xf]
        %v303 = vld [vmem:[#allocation2 + $0x48] sm:$0xf]
        %v304 = vld [vmem:[#allocation2 + $0x54] sm:$0xf]
        %v305 = vld [vmem:[#allocation2 + $0x58] sm:$0xf]
        %v306 = vld [vmem:[#allocation2 + $0x5c] sm:$0xf]
        %v307 = vld [vmem:[#allocation2 + $0x68] sm:$0xf]
        %v308 = vld [vmem:[#allocation2 + $0x6c] sm:$0xf]
        %v309 = vld [vmem:[#allocation2 + $0x70] sm:$0xf]
        %v310 = vld [vmem:[#allocation2 + $0x7c] sm:$0xf]
        %v311 = vld [vmem:[#allocation2 + $0x80] sm:$0xf]
        %v312 = vld [vmem:[#allocation2 + $0x84] sm:$0xf]
        %v313 = vld [vmem:[#allocation2 + $0x90] sm:$0xf]
        %v314 = vld [vmem:[#allocation2 + $0x94] sm:$0xf]
        %v315 = vld [vmem:[#allocation2 + $0x98] sm:$0xf]
        %v316 = vld [vmem:[#allocation2 + $0xa4] sm:$0xf]
        %v317 = vld [vmem:[#allocation2 + $0xa8] sm:$0xf]
        %v318 = vld [vmem:[#allocation2 + $0xac] sm:$0xf]
        %v319 = vld [vmem:[#allocation2 + $0xb8] sm:$0xf]
        %v320 = vld [vmem:[#allocation2 + $0xbc] sm:$0xf]
        %v321 = vld [vmem:[#allocation2 + $0xc0] sm:$0xf]
        %vm322 = vsmask.f32 256
        %vm323 = vsmask.f32 4368
        %vm324 = vmor %vm322, %vm323
        %v326 = vshrl.u32 %v292, 16
        %v328 = vrot.slane %v326, 7
        %v329 = vrot.slane %v328, 4
        %v331 = vshrl.u32 %v293, 16
        %v333 = vrot.slane %v331, 7
        %v334 = vshll.u32 %v293, 16
        %v336 = vor.u32 %v333, %v334
        %v337 = vsel %vm324, %v329, %v336
        %v339 = vshrl.u32 %v295, 16
        %v341 = vrot.slane %v339, 7
        %v342 = vrot.slane %v341, 4
        %v344 = vshrl.u32 %v296, 16
        %v346 = vrot.slane %v344, 7
        %v347 = vshll.u32 %v296, 16
        %v349 = vor.u32 %v346, %v347
        %v350 = vsel %vm324, %v342, %v349
        %v352 = vshrl.u32 %v298, 16
        %v354 = vrot.slane %v352, 7
        %v355 = vrot.slane %v354, 4
        %v357 = vshrl.u32 %v299, 16
        %v359 = vrot.slane %v357, 7
        %v360 = vshll.u32 %v299, 16
        %v362 = vor.u32 %v359, %v360
        %v363 = vsel %vm324, %v355, %v362
        %v365 = vshrl.u32 %v301, 16
        %v367 = vrot.slane %v365, 7
        %v368 = vrot.slane %v367, 4
        %v370 = vshrl.u32 %v302, 16
        %v372 = vrot.slane %v370, 7
        %v373 = vshll.u32 %v302, 16
        %v375 = vor.u32 %v372, %v373
        %v376 = vsel %vm324, %v368, %v375
        %v378 = vshrl.u32 %v304, 16
        %v380 = vrot.slane %v378, 7
        %v381 = vrot.slane %v380, 4
        %v383 = vshrl.u32 %v305, 16
        %v385 = vrot.slane %v383, 7
        %v386 = vshll.u32 %v305, 16
        %v388 = vor.u32 %v385, %v386
        %v389 = vsel %vm324, %v381, %v388
        %v391 = vshrl.u32 %v307, 16
        %v393 = vrot.slane %v391, 7
        %v394 = vrot.slane %v393, 4
        %v396 = vshrl.u32 %v308, 16
        %v398 = vrot.slane %v396, 7
        %v399 = vshll.u32 %v308, 16
        %v401 = vor.u32 %v398, %v399
        %v402 = vsel %vm324, %v394, %v401
        %v404 = vshrl.u32 %v310, 16
        %v406 = vrot.slane %v404, 7
        %v407 = vrot.slane %v406, 4
        %v409 = vshrl.u32 %v311, 16
        %v411 = vrot.slane %v409, 7
        %v412 = vshll.u32 %v311, 16
        %v414 = vor.u32 %v411, %v412
        %v415 = vsel %vm324, %v407, %v414
        %v417 = vshrl.u32 %v313, 16
        %v419 = vrot.slane %v417, 7
        %v420 = vrot.slane %v419, 4
        %v422 = vshrl.u32 %v314, 16
        %v424 = vrot.slane %v422, 7
        %v425 = vshll.u32 %v314, 16
        %v427 = vor.u32 %v424, %v425
        %v428 = vsel %vm324, %v420, %v427
        %vm429 = vsmask.f32 3328
        %vm430 = vsmask.f32 7440
        %vm431 = vmor %vm429, %vm430
        %v432 = vrot.slane %v331, 4
        %v433 = vrot.slane %v334, 5
        %v434 = vor.u32 %v432, %v433
        %v435 = vrot.slane %v434, 4
        %v437 = vshll.u32 %v294, 16
        %v439 = vrot.slane %v437, 5
        %v440 = vsel %vm431, %v435, %v439
        %v441 = vrot.slane %v344, 4
        %v442 = vrot.slane %v347, 5
        %v443 = vor.u32 %v441, %v442
        %v444 = vrot.slane %v443, 4
        %v446 = vshll.u32 %v297, 16
        %v448 = vrot.slane %v446, 5
        %v449 = vsel %vm431, %v444, %v448
        %v450 = vrot.slane %v357, 4
        %v451 = vrot.slane %v360, 5
        %v452 = vor.u32 %v450, %v451
        %v453 = vrot.slane %v452, 4
        %v455 = vshll.u32 %v300, 16
        %v457 = vrot.slane %v455, 5
        %v458 = vsel %vm431, %v453, %v457
        %v459 = vrot.slane %v370, 4
        %v460 = vrot.slane %v373, 5
        %v461 = vor.u32 %v459, %v460
        %v462 = vrot.slane %v461, 4
        %v464 = vshll.u32 %v303, 16
        %v466 = vrot.slane %v464, 5
        %v467 = vsel %vm431, %v462, %v466
        %v468 = vrot.slane %v383, 4
        %v469 = vrot.slane %v386, 5
        %v470 = vor.u32 %v468, %v469
        %v471 = vrot.slane %v470, 4
        %v473 = vshll.u32 %v306, 16
        %v475 = vrot.slane %v473, 5
        %v476 = vsel %vm431, %v471, %v475
        %v477 = vrot.slane %v396, 4
        %v478 = vrot.slane %v399, 5
        %v479 = vor.u32 %v477, %v478
        %v480 = vrot.slane %v479, 4
        %v482 = vshll.u32 %v309, 16
        %v484 = vrot.slane %v482, 5
        %v485 = vsel %vm431, %v480, %v484
        %v486 = vrot.slane %v409, 4
        %v487 = vrot.slane %v412, 5
        %v488 = vor.u32 %v486, %v487
        %v489 = vrot.slane %v488, 4
        %v491 = vshll.u32 %v312, 16
        %v493 = vrot.slane %v491, 5
        %v494 = vsel %vm431, %v489, %v493
        %v495 = vrot.slane %v422, 4
        %v496 = vrot.slane %v425, 5
        %v497 = vor.u32 %v495, %v496
        %v498 = vrot.slane %v497, 4
        %v500 = vshll.u32 %v315, 16
        %v502 = vrot.slane %v500, 5
        %v503 = vsel %vm431, %v498, %v502
        %v505 = vshrl.u32 %v316, 16
        %v507 = vrot.slane %v505, 7
        %v508 = vrot.slane %v507, 4
        %v510 = vshrl.u32 %v317, 16
        %v512 = vrot.slane %v510, 7
        %v513 = vshll.u32 %v317, 16
        %v515 = vor.u32 %v512, %v513
        %v516 = vsel %vm324, %v508, %v515
        %v517 = vrot.slane %v510, 4
        %v518 = vrot.slane %v513, 5
        %v519 = vor.u32 %v517, %v518
        %v520 = vrot.slane %v519, 4
        %v522 = vshll.u32 %v318, 16
        %v524 = vrot.slane %v522, 5
        %v525 = vsel %vm431, %v520, %v524
        %v527 = vshrl.u32 %v319, 16
        %v529 = vrot.slane %v527, 7
        %v530 = vrot.slane %v529, 4
        %v532 = vshrl.u32 %v320, 16
        %v534 = vrot.slane %v532, 7
        %v535 = vshll.u32 %v320, 16
        %v537 = vor.u32 %v534, %v535
        %v538 = vsel %vm324, %v530, %v537
        %v539 = vrot.slane %v532, 4
        %v540 = vrot.slane %v535, 5
        %v541 = vor.u32 %v539, %v540
        %v542 = vrot.slane %v541, 4
        %v544 = vshll.u32 %v321, 16
        %v546 = vrot.slane %v544, 5
        %v547 = vsel %vm431, %v542, %v546
        %v548 = vunpack.c.l.b16 %v337
        %v549 = vunpack.c.l.b16 %v350
        %v550 = vunpack.c.l.b16 %v363
        %v551 = vunpack.c.l.b16 %v376
        %v552 = vunpack.c.l.b16 %v389
        %v553 = vunpack.c.l.b16 %v402
        %v554 = vunpack.c.l.b16 %v415
        %v555 = vunpack.c.l.b16 %v428
        %v556 = vpack.c.b16 %v549, %v548
        %v557 = vpack.c.b16 %v551, %v550
        %v558 = vpack.c.b16 %v553, %v552
        %v559 = vpack.c.b16 %v555, %v554
        %v568 = vunpack.c.l.b16 %v293
        %v569 = vunpack.c.l.b16 %v296
        %v570 = vunpack.c.l.b16 %v299
        %v571 = vunpack.c.l.b16 %v302
        %v572 = vunpack.c.l.b16 %v305
        %v573 = vunpack.c.l.b16 %v308
        %v574 = vunpack.c.l.b16 %v311
        %v575 = vunpack.c.l.b16 %v314
        %v576 = vpack.c.b16 %v569, %v568
        %v577 = vpack.c.b16 %v571, %v570
        %v578 = vpack.c.b16 %v573, %v572
        %v579 = vpack.c.b16 %v575, %v574
        %580 = vrot.lane.b32.xlu0 %v576, 4
        %v581 = vpop.permute.xlu0 %580
        %582 = vrot.lane.b32.xlu0 %v577, 4
        %v583 = vpop.permute.xlu0 %582
        %584 = vrot.lane.b32.xlu0 %v578, 4
        %v585 = vpop.permute.xlu0 %584
        %586 = vrot.lane.b32.xlu0 %v579, 4
        %v587 = vpop.permute.xlu0 %586
        %v588 = vunpack.c.l.b16 %v440
        %v589 = vunpack.c.l.b16 %v449
        %v590 = vunpack.c.l.b16 %v458
        %v591 = vunpack.c.l.b16 %v467
        %v592 = vunpack.c.l.b16 %v476
        %v593 = vunpack.c.l.b16 %v485
        %v594 = vunpack.c.l.b16 %v494
        %v595 = vunpack.c.l.b16 %v503
        %v596 = vpack.c.b16 %v589, %v588
        %v597 = vpack.c.b16 %v591, %v590
        %v598 = vpack.c.b16 %v593, %v592
        %v599 = vpack.c.b16 %v595, %v594
        %600 = vrot.lane.b32.xlu0 %v596, 8
        %v601 = vpop.permute.xlu0 %600
        %602 = vrot.lane.b32.xlu0 %v597, 8
        %v603 = vpop.permute.xlu0 %602
        %604 = vrot.lane.b32.xlu0 %v598, 8
        %v605 = vpop.permute.xlu0 %604
        %606 = vrot.lane.b32.xlu0 %v599, 8
        %v607 = vpop.permute.xlu0 %606
        %v608 = vunpack.c.l.b16 %v516
        %v609 = vpack.c.b16 %v550, %v549
        %v610 = vpack.c.b16 %v552, %v551
        %v611 = vpack.c.b16 %v554, %v553
        %v612 = vpack.c.b16 %v608, %v555
        %613 = vrot.lane.b32.xlu0 %v609, 12
        %v614 = vpop.permute.xlu0 %613
        %615 = vrot.lane.b32.xlu0 %v610, 12
        %v616 = vpop.permute.xlu0 %615
        %617 = vrot.lane.b32.xlu0 %v611, 12
        %v618 = vpop.permute.xlu0 %617
        %619 = vrot.lane.b32.xlu0 %v612, 12
        %v620 = vpop.permute.xlu0 %619
        %v622 = vunpack.c.l.b16 %v317
        %v623 = vpack.c.b16 %v570, %v569
        %v624 = vpack.c.b16 %v572, %v571
        %v625 = vpack.c.b16 %v574, %v573
        %v626 = vpack.c.b16 %v622, %v575
        %627 = vrot.lane.b32.xlu0 %v623, 16
        %v628 = vpop.permute.xlu0 %627
        %629 = vrot.lane.b32.xlu0 %v624, 16
        %v630 = vpop.permute.xlu0 %629
        %631 = vrot.lane.b32.xlu0 %v625, 16
        %v632 = vpop.permute.xlu0 %631
        %633 = vrot.lane.b32.xlu0 %v626, 16
        %v634 = vpop.permute.xlu0 %633
        %v635 = vunpack.c.l.b16 %v525
        %v636 = vpack.c.b16 %v590, %v589
        %v637 = vpack.c.b16 %v592, %v591
        %v638 = vpack.c.b16 %v594, %v593
        %v639 = vpack.c.b16 %v635, %v595
        %640 = vrot.lane.b32.xlu0 %v636, 20
        %v641 = vpop.permute.xlu0 %640
        %642 = vrot.lane.b32.xlu0 %v637, 20
        %v643 = vpop.permute.xlu0 %642
        %644 = vrot.lane.b32.xlu0 %v638, 20
        %v645 = vpop.permute.xlu0 %644
        %646 = vrot.lane.b32.xlu0 %v639, 20
        %v647 = vpop.permute.xlu0 %646
        %v648 = vunpack.c.l.b16 %v538
        %v649 = vpack.c.b16 %v648, %v608
        %650 = vrot.lane.b32.xlu0 %v557, 24
        %v651 = vpop.permute.xlu0 %650
        %652 = vrot.lane.b32.xlu0 %v558, 24
        %v653 = vpop.permute.xlu0 %652
        %654 = vrot.lane.b32.xlu0 %v559, 24
        %v655 = vpop.permute.xlu0 %654
        %656 = vrot.lane.b32.xlu0 %v649, 24
        %v657 = vpop.permute.xlu0 %656
        %v659 = vunpack.c.l.b16 %v320
        %v660 = vpack.c.b16 %v659, %v622
        %661 = vrot.lane.b32.xlu0 %v577, 28
        %v662 = vpop.permute.xlu0 %661
        %663 = vrot.lane.b32.xlu0 %v578, 28
        %v664 = vpop.permute.xlu0 %663
        %665 = vrot.lane.b32.xlu0 %v579, 28
        %v666 = vpop.permute.xlu0 %665
        %667 = vrot.lane.b32.xlu0 %v660, 28
        %v668 = vpop.permute.xlu0 %667
        %v669 = vunpack.c.l.b16 %v547
        %v670 = vpack.c.b16 %v669, %v635
        %671 = vrot.lane.b32.xlu0 %v597, 32
        %v672 = vpop.permute.xlu0 %671
        %673 = vrot.lane.b32.xlu0 %v598, 32
        %v674 = vpop.permute.xlu0 %673
        %675 = vrot.lane.b32.xlu0 %v599, 32
        %v676 = vpop.permute.xlu0 %675
        %677 = vrot.lane.b32.xlu0 %v670, 32
        %v678 = vpop.permute.xlu0 %677
        %vm679 = vcmask 31744
        %v682 = vsel %vm679, %v556, %v581
        %v685 = vsel %vm679, %v557, %v583
        %v688 = vsel %vm679, %v558, %v585
        %v691 = vsel %vm679, %v559, %v587
        %vm692 = vcmask 64512
        %v694 = vsel %vm692, %v682, %v601
        %v696 = vsel %vm692, %v685, %v603
        %v698 = vsel %vm692, %v688, %v605
        %v700 = vsel %vm692, %v691, %v607
        %vm701 = vcmask 97280
        %v703 = vsel %vm701, %v694, %v614
        %v705 = vsel %vm701, %v696, %v616
        %v707 = vsel %vm701, %v698, %v618
        %v709 = vsel %vm701, %v700, %v620
        %vm710 = vcmask 130048
        %v712 = vsel %vm710, %v703, %v628
        %v714 = vsel %vm710, %v705, %v630
        %v716 = vsel %vm710, %v707, %v632
        %v718 = vsel %vm710, %v709, %v634
        %vm719 = vcmask 162816
        %v721 = vsel %vm719, %v712, %v641
        %v723 = vsel %vm719, %v714, %v643
        %v725 = vsel %vm719, %v716, %v645
        %v727 = vsel %vm719, %v718, %v647
        %vm728 = vcmask 195584
        %v730 = vsel %vm728, %v721, %v651
        %v732 = vsel %vm728, %v723, %v653
        %v734 = vsel %vm728, %v725, %v655
        %v736 = vsel %vm728, %v727, %v657
        %vm737 = vcmask 228352
        %v739 = vsel %vm737, %v730, %v662
        %v741 = vsel %vm737, %v732, %v664
        %v743 = vsel %vm737, %v734, %v666
        %v745 = vsel %vm737, %v736, %v668
        %vm746 = vcmask 261120
        %v748 = vsel %vm746, %v739, %v672
        %v750 = vsel %vm746, %v741, %v674
        %v752 = vsel %vm746, %v743, %v676
        %v754 = vsel %vm746, %v745, %v678
        %v755 = vld [vmem:[%s1] sm:$0xf]
        %v756 = vld [vmem:[%s1 + $0x4] sm:$0xf]
        %v757 = vld [vmem:[%s1 + $0x8] sm:$0xf]
        %v758 = vld [vmem:[%s1 + $0xc] sm:$0xf]
        %v759 = vld [vmem:[%s1 + $0x10] sm:$0x3]
        %v760 = vld [vmem:[%s2] sm:$0x1]
        %v762 = vlaneseq
        %v763 = vshrl.u32 %v762, 7
        %v764 = vsub.s32 0, %v763
        %v765 = vrot.slane %v760, %v764
        %v772 = vunpack.c.l.b16 %v755
        %v773 = vunpack.c.l.b16 %v756
        %v774 = vunpack.c.l.b16 %v757
        %v775 = vunpack.c.l.b16 %v758
        %v776 = vunpack.c.l.b16 %v759
        %v777 = vpack.c.b16 %v773, %v772
        %v778 = vpack.c.b16 %v775, %v774
        %v779 = vpack.c.b16 %v776, %v776
        %vm782 = vcmask 293888
        %v783 = vsel %vm782, %v748, 0
        %v785 = vsel %vm782, %v750, 0
        %v787 = vsel %vm782, %v752, 0
        %v789 = vsel %vm782, %v754, 0
        %vm791 = vcmask 1041408
        %v793 = vsel %vm791, %v779, 0
        %795 = vmatprep.subr.bf16.mxu0 0
        %796 = vmatpush1.bf16.msra.mxu0 0
        %797 = vmatprep.subr.bf16.mxu0 0
        %798 = vmatpush1.bf16.msra.mxu0 0
        %799 = vmatprep.subr.bf16.mxu0 0
        %800 = vmatpush1.bf16.msra.mxu0 0
        %801 = vmatprep.subr.bf16.mxu0 0
        %802 = vmatpush1.bf16.msra.mxu0 0
        %803 = vmatprep.subr.bf16.mxu0 0
        %804 = vmatpush1.bf16.msra.mxu0 0
        %805 = vmatprep.subr.bf16.mxu0 0
        %806 = vmatpush1.bf16.msra.mxu0 %v793
        %807 = vmatprep.subr.bf16.mxu0 0
        %808 = vmatpush1.bf16.msra.mxu0 %v778
        %809 = vmatprep.subr.bf16.mxu0 0
        %810 = vmatpush1.bf16.msra.mxu0 %v777
        %811 = vmatprep.subr.bf16.mxu0 0
        %812 = vmatpush2.bf16.msra.mxu0 0
        %813 = vmatprep.subr.bf16.mxu0 0
        %814 = vmatpush2.bf16.msra.mxu0 0
        %815 = vmatprep.subr.bf16.mxu0 0
        %816 = vmatpush2.bf16.msra.mxu0 0
        %817 = vmatprep.subr.bf16.mxu0 0
        %818 = vmatpush2.bf16.msra.mxu0 0
        %819 = vmatprep.subr.bf16.mxu0 0
        %820 = vmatpush2.bf16.msra.mxu0 0
        %821 = vmatprep.subr.bf16.mxu0 0
        %822 = vmatpush2.bf16.msra.mxu0 0
        %823 = vmatprep.subr.bf16.mxu0 0
        %824 = vmatpush2.bf16.msra.mxu0 0
        %825 = vmatprep.subr.bf16.mxu0 0
        %826 = vmatpush2.bf16.msra.mxu0 0
        %827 = vmatprep.mubr.bf16.mxu0 0
        %828 = vmatmul.mubr.bf16.gmra.mxu0 %v783
        %v829 = vpop.f32.mrf.mxu0
        %v830 = vadd.f32 %v765, %v829
        %v831 = vpop.f32.mrf.mxu0
        %v832 = vpop.f32.mrf.mxu0
        %v833 = vadd.f32 %v765, %v832
        %v834 = vpop.f32.mrf.mxu0
        %835 = vmatprep.mubr.bf16.mxu0 0
        %836 = vmatmul.mubr.bf16.gmra.mxu0 %v785
        %v837 = vpop.f32.mrf.mxu0
        %v838 = vadd.f32 %v765, %v837
        %v839 = vpop.f32.mrf.mxu0
        %v840 = vpop.f32.mrf.mxu0
        %v841 = vadd.f32 %v765, %v840
        %v842 = vpop.f32.mrf.mxu0
        %843 = vmatprep.mubr.bf16.mxu0 0
        %844 = vmatmul.mubr.bf16.gmra.mxu0 %v787
        %v845 = vpop.f32.mrf.mxu0
        %v846 = vadd.f32 %v765, %v845
        %v847 = vpop.f32.mrf.mxu0
        %v848 = vpop.f32.mrf.mxu0
        %v849 = vadd.f32 %v765, %v848
        %v850 = vpop.f32.mrf.mxu0
        %851 = vmatprep.mubr.bf16.mxu0 0
        %852 = vmatmul.mubr.bf16.gmra.mxu0 %v789
        %v853 = vpop.f32.mrf.mxu0
        %v854 = vadd.f32 %v765, %v853
        %v855 = vpop.f32.mrf.mxu0
        %v856 = vpop.f32.mrf.mxu0
        %v857 = vadd.f32 %v765, %v856
        %v858 = vpop.f32.mrf.mxu0
        %859 = vdwg.mxu0
        %v860 = vmax.f32 %v830, 0.0
        %v861 = vmax.f32 %v833, 0.0
        %v862 = vmax.f32 %v838, 0.0
        %v863 = vmax.f32 %v841, 0.0
        %v864 = vmax.f32 %v846, 0.0
        %v865 = vmax.f32 %v849, 0.0
        %v866 = vmax.f32 %v854, 0.0
        %v867 = vmax.f32 %v857, 0.0
        %vm868 = vcmask 60416
        %869 = vst.msk [vmem:[#allocation3] sm:$0xf] %vm868, 0
        %870 = vst.msk [vmem:[#allocation3 + $0x4] sm:$0xf] %vm868, 0
        %871 = vst.msk [vmem:[#allocation3 + $0x8] sm:$0xf] %vm868, 0
        %872 = vst.msk [vmem:[#allocation3 + $0xc] sm:$0xf] %vm868, 0
        %873 = vst.msk [vmem:[#allocation3 + $0x10] sm:$0xf] %vm868, 0
        %874 = vst.msk [vmem:[#allocation3 + $0x14] sm:$0xf] %vm868, 0
        %875 = vst.msk [vmem:[#allocation3 + $0x18] sm:$0xf] %vm868, 0
        %876 = vst.msk [vmem:[#allocation3 + $0x1c] sm:$0xf] %vm868, 0
        %877 = vst.msk [vmem:[#allocation3 + $0x20] sm:$0xf] %vm868, 0
        %878 = vst.msk [vmem:[#allocation3 + $0x24] sm:$0xf] %vm868, 0
        %879 = vst.msk [vmem:[#allocation3 + $0x28] sm:$0xf] %vm868, 0
        %880 = vst.msk [vmem:[#allocation3 + $0x2c] sm:$0xf] %vm868, 0
        %881 = vst.msk [vmem:[#allocation3 + $0x30] sm:$0xf] %vm868, 0
        %882 = vst.msk [vmem:[#allocation3 + $0x34] sm:$0xf] %vm868, 0
        %883 = vst.msk [vmem:[#allocation3 + $0x38] sm:$0xf] %vm868, 0
        %884 = vst.msk [vmem:[#allocation3 + $0x3c] sm:$0xf] %vm868, 0
        %885 = vst.msk [vmem:[#allocation3 + $0x40] sm:$0xf] %vm868, 0
        %886 = vst.msk [vmem:[#allocation3 + $0x44] sm:$0xf] %vm868, 0
        %887 = vst.msk [vmem:[#allocation3 + $0x48] sm:$0xf] %vm868, 0
        %888 = vst.msk [vmem:[#allocation3 + $0x4c] sm:$0xf] %vm868, 0
        %889 = vst.msk [vmem:[#allocation3 + $0x50] sm:$0xf] %vm868, 0
        %890 = vst.msk [vmem:[#allocation3 + $0x54] sm:$0xf] %vm868, 0
        %891 = vst.msk [vmem:[#allocation3 + $0x58] sm:$0xf] %vm868, 0
        %892 = vst.msk [vmem:[#allocation3 + $0x5c] sm:$0xf] %vm868, 0
        %893 = vst.msk [vmem:[#allocation3 + $0x60] sm:$0xf] %vm868, 0
        %894 = vst.msk [vmem:[#allocation3 + $0x64] sm:$0xf] %vm868, 0
        %895 = vst.msk [vmem:[#allocation3 + $0x68] sm:$0xf] %vm868, 0
        %896 = vst.msk [vmem:[#allocation3 + $0x6c] sm:$0xf] %vm868, 0
        %897 = vst.msk [vmem:[#allocation3 + $0x70] sm:$0xf] %vm868, 0
        %898 = vst.msk [vmem:[#allocation3 + $0x74] sm:$0xf] %vm868, 0
        %899 = vst.msk [vmem:[#allocation3 + $0x78] sm:$0xf] %vm868, 0
        %900 = vst.msk [vmem:[#allocation3 + $0x7c] sm:$0xf] %vm868, 0
        %901 = vst.msk [vmem:[#allocation3 + $0x80] sm:$0xf] %vm868, 0
        %902 = vst.msk [vmem:[#allocation3 + $0x84] sm:$0xf] %vm868, 0
        %903 = vst.msk [vmem:[#allocation3 + $0x88] sm:$0xf] %vm868, 0
        %904 = vst.msk [vmem:[#allocation3 + $0x8c] sm:$0xf] %vm868, 0
        %905 = vst.msk [vmem:[#allocation3 + $0x90] sm:$0xf] %vm868, 0
        %906 = vst.msk [vmem:[#allocation3 + $0x94] sm:$0xf] %vm868, 0
        %907 = vst.msk [vmem:[#allocation3 + $0x98] sm:$0xf] %vm868, 0
        %908 = vst.msk [vmem:[#allocation3 + $0x9c] sm:$0xf] %vm868, 0
        %909 = vst.msk [vmem:[#allocation3 + $0xa0] sm:$0xf] %vm868, 0
        %910 = vst.msk [vmem:[#allocation3 + $0xa4] sm:$0xf] %vm868, 0
        %911 = vst.msk [vmem:[#allocation3 + $0xa8] sm:$0xf] %vm868, 0
        %912 = vst.msk [vmem:[#allocation3 + $0xac] sm:$0xf] %vm868, 0
        %913 = vst.msk [vmem:[#allocation3 + $0xb0] sm:$0xf] %vm868, 0
        %914 = vst.msk [vmem:[#allocation3 + $0xb4] sm:$0xf] %vm868, 0
        %915 = vst.msk [vmem:[#allocation3 + $0xb8] sm:$0xf] %vm868, 0
        %916 = vst.msk [vmem:[#allocation3 + $0xbc] sm:$0xf] %vm868, 0
        %917 = vst.msk [vmem:[#allocation3 + $0xc0] sm:$0xf] %vm868, 0
        %918 = vst.msk [vmem:[#allocation3 + $0xc4] sm:$0xf] %vm868, 0
        %v919 = vpack.c.bf16 %v860, %v860
        %v920 = vpack.c.bf16 %v861, %v861
        %v921 = vpack.c.bf16 %v862, %v862
        %v922 = vpack.c.bf16 %v863, %v863
        %v923 = vpack.c.bf16 %v864, %v864
        %v924 = vpack.c.bf16 %v865, %v865
        %v925 = vpack.c.bf16 %v866, %v866
        %v926 = vpack.c.bf16 %v867, %v867
        %s927 = scalar_lea.vmem [#allocation3], 20
        %928 = vst.msk [vmem:[%s927 + $0x8] sm:$0xf] %vm868, %v919
        %929 = vst.msk [vmem:[%s927 + $0x1c] sm:$0xf] %vm868, %v920
        %930 = vst.msk [vmem:[%s927 + $0x30] sm:$0xf] %vm868, %v921
        %931 = vst.msk [vmem:[%s927 + $0x44] sm:$0xf] %vm868, %v922
        %932 = vst.msk [vmem:[%s927 + $0x58] sm:$0xf] %vm868, %v923
        %933 = vst.msk [vmem:[%s927 + $0x6c] sm:$0xf] %vm868, %v924
        %934 = vst.msk [vmem:[%s927 + $0x80] sm:$0xf] %vm868, %v925
        %935 = vst.msk [vmem:[%s927 + $0x94] sm:$0xf] %vm868, %v926
        %v936 = vld [vmem:[#allocation3 + $0x4] sm:$0xf]
        %v937 = vld [vmem:[#allocation3 + $0x8] sm:$0xf]
        %v938 = vld [vmem:[#allocation3 + $0xc] sm:$0xf]
        %v939 = vld [vmem:[#allocation3 + $0x18] sm:$0xf]
        %v940 = vld [vmem:[#allocation3 + $0x1c] sm:$0xf]
        %v941 = vld [vmem:[#allocation3 + $0x20] sm:$0xf]
        %v942 = vld [vmem:[#allocation3 + $0x2c] sm:$0xf]
        %v943 = vld [vmem:[#allocation3 + $0x30] sm:$0xf]
        %v944 = vld [vmem:[#allocation3 + $0x34] sm:$0xf]
        %v945 = vld [vmem:[#allocation3 + $0x40] sm:$0xf]
        %v946 = vld [vmem:[#allocation3 + $0x44] sm:$0xf]
        %v947 = vld [vmem:[#allocation3 + $0x48] sm:$0xf]
        %v948 = vld [vmem:[#allocation3 + $0x54] sm:$0xf]
        %v949 = vld [vmem:[#allocation3 + $0x58] sm:$0xf]
        %v950 = vld [vmem:[#allocation3 + $0x5c] sm:$0xf]
        %v951 = vld [vmem:[#allocation3 + $0x68] sm:$0xf]
        %v952 = vld [vmem:[#allocation3 + $0x6c] sm:$0xf]
        %v953 = vld [vmem:[#allocation3 + $0x70] sm:$0xf]
        %v954 = vld [vmem:[#allocation3 + $0x7c] sm:$0xf]
        %v955 = vld [vmem:[#allocation3 + $0x80] sm:$0xf]
        %v956 = vld [vmem:[#allocation3 + $0x84] sm:$0xf]
        %v957 = vld [vmem:[#allocation3 + $0x90] sm:$0xf]
        %v958 = vld [vmem:[#allocation3 + $0x94] sm:$0xf]
        %v959 = vld [vmem:[#allocation3 + $0x98] sm:$0xf]
        %v960 = vld [vmem:[#allocation3 + $0xa4] sm:$0xf]
        %v961 = vld [vmem:[#allocation3 + $0xa8] sm:$0xf]
        %v962 = vld [vmem:[#allocation3 + $0xac] sm:$0xf]
        %v963 = vld [vmem:[#allocation3 + $0xb8] sm:$0xf]
        %v964 = vld [vmem:[#allocation3 + $0xbc] sm:$0xf]
        %v965 = vld [vmem:[#allocation3 + $0xc0] sm:$0xf]
        %v967 = vshrl.u32 %v936, 16
        %v969 = vrot.slane %v967, 7
        %v970 = vrot.slane %v969, 4
        %v972 = vshrl.u32 %v937, 16
        %v974 = vrot.slane %v972, 7
        %v975 = vshll.u32 %v937, 16
        %v977 = vor.u32 %v974, %v975
        %v978 = vsel %vm324, %v970, %v977
        %v980 = vshrl.u32 %v939, 16
        %v982 = vrot.slane %v980, 7
        %v983 = vrot.slane %v982, 4
        %v985 = vshrl.u32 %v940, 16
        %v987 = vrot.slane %v985, 7
        %v988 = vshll.u32 %v940, 16
        %v990 = vor.u32 %v987, %v988
        %v991 = vsel %vm324, %v983, %v990
        %v993 = vshrl.u32 %v942, 16
        %v995 = vrot.slane %v993, 7
        %v996 = vrot.slane %v995, 4
        %v998 = vshrl.u32 %v943, 16
        %v1000 = vrot.slane %v998, 7
        %v1001 = vshll.u32 %v943, 16
        %v1003 = vor.u32 %v1000, %v1001
        %v1004 = vsel %vm324, %v996, %v1003
        %v1006 = vshrl.u32 %v945, 16
        %v1008 = vrot.slane %v1006, 7
        %v1009 = vrot.slane %v1008, 4
        %v1011 = vshrl.u32 %v946, 16
        %v1013 = vrot.slane %v1011, 7
        %v1014 = vshll.u32 %v946, 16
        %v1016 = vor.u32 %v1013, %v1014
        %v1017 = vsel %vm324, %v1009, %v1016
        %v1019 = vshrl.u32 %v948, 16
        %v1021 = vrot.slane %v1019, 7
        %v1022 = vrot.slane %v1021, 4
        %v1024 = vshrl.u32 %v949, 16
        %v1026 = vrot.slane %v1024, 7
        %v1027 = vshll.u32 %v949, 16
        %v1029 = vor.u32 %v1026, %v1027
        %v1030 = vsel %vm324, %v1022, %v1029
        %v1032 = vshrl.u32 %v951, 16
        %v1034 = vrot.slane %v1032, 7
        %v1035 = vrot.slane %v1034, 4
        %v1037 = vshrl.u32 %v952, 16
        %v1039 = vrot.slane %v1037, 7
        %v1040 = vshll.u32 %v952, 16
        %v1042 = vor.u32 %v1039, %v1040
        %v1043 = vsel %vm324, %v1035, %v1042
        %v1045 = vshrl.u32 %v954, 16
        %v1047 = vrot.slane %v1045, 7
        %v1048 = vrot.slane %v1047, 4
        %v1050 = vshrl.u32 %v955, 16
        %v1052 = vrot.slane %v1050, 7
        %v1053 = vshll.u32 %v955, 16
        %v1055 = vor.u32 %v1052, %v1053
        %v1056 = vsel %vm324, %v1048, %v1055
        %v1058 = vshrl.u32 %v957, 16
        %v1060 = vrot.slane %v1058, 7
        %v1061 = vrot.slane %v1060, 4
        %v1063 = vshrl.u32 %v958, 16
        %v1065 = vrot.slane %v1063, 7
        %v1066 = vshll.u32 %v958, 16
        %v1068 = vor.u32 %v1065, %v1066
        %v1069 = vsel %vm324, %v1061, %v1068
        %v1070 = vrot.slane %v972, 4
        %v1071 = vrot.slane %v975, 5
        %v1072 = vor.u32 %v1070, %v1071
        %v1073 = vrot.slane %v1072, 4
        %v1075 = vshll.u32 %v938, 16
        %v1077 = vrot.slane %v1075, 5
        %v1078 = vsel %vm431, %v1073, %v1077
        %v1079 = vrot.slane %v985, 4
        %v1080 = vrot.slane %v988, 5
        %v1081 = vor.u32 %v1079, %v1080
        %v1082 = vrot.slane %v1081, 4
        %v1084 = vshll.u32 %v941, 16
        %v1086 = vrot.slane %v1084, 5
        %v1087 = vsel %vm431, %v1082, %v1086
        %v1088 = vrot.slane %v998, 4
        %v1089 = vrot.slane %v1001, 5
        %v1090 = vor.u32 %v1088, %v1089
        %v1091 = vrot.slane %v1090, 4
        %v1093 = vshll.u32 %v944, 16
        %v1095 = vrot.slane %v1093, 5
        %v1096 = vsel %vm431, %v1091, %v1095
        %v1097 = vrot.slane %v1011, 4
        %v1098 = vrot.slane %v1014, 5
        %v1099 = vor.u32 %v1097, %v1098
        %v1100 = vrot.slane %v1099, 4
        %v1102 = vshll.u32 %v947, 16
        %v1104 = vrot.slane %v1102, 5
        %v1105 = vsel %vm431, %v1100, %v1104
        %v1106 = vrot.slane %v1024, 4
        %v1107 = vrot.slane %v1027, 5
        %v1108 = vor.u32 %v1106, %v1107
        %v1109 = vrot.slane %v1108, 4
        %v1111 = vshll.u32 %v950, 16
        %v1113 = vrot.slane %v1111, 5
        %v1114 = vsel %vm431, %v1109, %v1113
        %v1115 = vrot.slane %v1037, 4
        %v1116 = vrot.slane %v1040, 5
        %v1117 = vor.u32 %v1115, %v1116
        %v1118 = vrot.slane %v1117, 4
        %v1120 = vshll.u32 %v953, 16
        %v1122 = vrot.slane %v1120, 5
        %v1123 = vsel %vm431, %v1118, %v1122
        %v1124 = vrot.slane %v1050, 4
        %v1125 = vrot.slane %v1053, 5
        %v1126 = vor.u32 %v1124, %v1125
        %v1127 = vrot.slane %v1126, 4
        %v1129 = vshll.u32 %v956, 16
        %v1131 = vrot.slane %v1129, 5
        %v1132 = vsel %vm431, %v1127, %v1131
        %v1133 = vrot.slane %v1063, 4
        %v1134 = vrot.slane %v1066, 5
        %v1135 = vor.u32 %v1133, %v1134
        %v1136 = vrot.slane %v1135, 4
        %v1138 = vshll.u32 %v959, 16
        %v1140 = vrot.slane %v1138, 5
        %v1141 = vsel %vm431, %v1136, %v1140
        %v1143 = vshrl.u32 %v960, 16
        %v1145 = vrot.slane %v1143, 7
        %v1146 = vrot.slane %v1145, 4
        %v1148 = vshrl.u32 %v961, 16
        %v1150 = vrot.slane %v1148, 7
        %v1151 = vshll.u32 %v961, 16
        %v1153 = vor.u32 %v1150, %v1151
        %v1154 = vsel %vm324, %v1146, %v1153
        %v1155 = vrot.slane %v1148, 4
        %v1156 = vrot.slane %v1151, 5
        %v1157 = vor.u32 %v1155, %v1156
        %v1158 = vrot.slane %v1157, 4
        %v1160 = vshll.u32 %v962, 16
        %v1162 = vrot.slane %v1160, 5
        %v1163 = vsel %vm431, %v1158, %v1162
        %v1165 = vshrl.u32 %v963, 16
        %v1167 = vrot.slane %v1165, 7
        %v1168 = vrot.slane %v1167, 4
        %v1170 = vshrl.u32 %v964, 16
        %v1172 = vrot.slane %v1170, 7
        %v1173 = vshll.u32 %v964, 16
        %v1175 = vor.u32 %v1172, %v1173
        %v1176 = vsel %vm324, %v1168, %v1175
        %v1177 = vrot.slane %v1170, 4
        %v1178 = vrot.slane %v1173, 5
        %v1179 = vor.u32 %v1177, %v1178
        %v1180 = vrot.slane %v1179, 4
        %v1182 = vshll.u32 %v965, 16
        %v1184 = vrot.slane %v1182, 5
        %v1185 = vsel %vm431, %v1180, %v1184
        %v1186 = vunpack.c.l.b16 %v978
        %v1187 = vunpack.c.l.b16 %v991
        %v1188 = vunpack.c.l.b16 %v1004
        %v1189 = vunpack.c.l.b16 %v1017
        %v1190 = vunpack.c.l.b16 %v1030
        %v1191 = vunpack.c.l.b16 %v1043
        %v1192 = vunpack.c.l.b16 %v1056
        %v1193 = vunpack.c.l.b16 %v1069
        %v1194 = vpack.c.b16 %v1187, %v1186
        %v1195 = vpack.c.b16 %v1189, %v1188
        %v1196 = vpack.c.b16 %v1191, %v1190
        %v1197 = vpack.c.b16 %v1193, %v1192
        %v1206 = vunpack.c.l.b16 %v937
        %v1207 = vunpack.c.l.b16 %v940
        %v1208 = vunpack.c.l.b16 %v943
        %v1209 = vunpack.c.l.b16 %v946
        %v1210 = vunpack.c.l.b16 %v949
        %v1211 = vunpack.c.l.b16 %v952
        %v1212 = vunpack.c.l.b16 %v955
        %v1213 = vunpack.c.l.b16 %v958
        %v1214 = vpack.c.b16 %v1207, %v1206
        %v1215 = vpack.c.b16 %v1209, %v1208
        %v1216 = vpack.c.b16 %v1211, %v1210
        %v1217 = vpack.c.b16 %v1213, %v1212
        %1218 = vrot.lane.b32.xlu0 %v1214, 8
        %v1219 = vpop.permute.xlu0 %1218
        %1220 = vrot.lane.b32.xlu0 %v1215, 8
        %v1221 = vpop.permute.xlu0 %1220
        %1222 = vrot.lane.b32.xlu0 %v1216, 8
        %v1223 = vpop.permute.xlu0 %1222
        %1224 = vrot.lane.b32.xlu0 %v1217, 8
        %v1225 = vpop.permute.xlu0 %1224
        %v1226 = vunpack.c.l.b16 %v1078
        %v1227 = vunpack.c.l.b16 %v1087
        %v1228 = vunpack.c.l.b16 %v1096
        %v1229 = vunpack.c.l.b16 %v1105
        %v1230 = vunpack.c.l.b16 %v1114
        %v1231 = vunpack.c.l.b16 %v1123
        %v1232 = vunpack.c.l.b16 %v1132
        %v1233 = vunpack.c.l.b16 %v1141
        %v1234 = vpack.c.b16 %v1227, %v1226
        %v1235 = vpack.c.b16 %v1229, %v1228
        %v1236 = vpack.c.b16 %v1231, %v1230
        %v1237 = vpack.c.b16 %v1233, %v1232
        %1238 = vrot.lane.b32.xlu0 %v1234, 16
        %v1239 = vpop.permute.xlu0 %1238
        %1240 = vrot.lane.b32.xlu0 %v1235, 16
        %v1241 = vpop.permute.xlu0 %1240
        %1242 = vrot.lane.b32.xlu0 %v1236, 16
        %v1243 = vpop.permute.xlu0 %1242
        %1244 = vrot.lane.b32.xlu0 %v1237, 16
        %v1245 = vpop.permute.xlu0 %1244
        %v1246 = vunpack.c.l.b16 %v1154
        %v1247 = vpack.c.b16 %v1188, %v1187
        %v1248 = vpack.c.b16 %v1190, %v1189
        %v1249 = vpack.c.b16 %v1192, %v1191
        %v1250 = vpack.c.b16 %v1246, %v1193
        %1251 = vrot.lane.b32.xlu0 %v1247, 24
        %v1252 = vpop.permute.xlu0 %1251
        %1253 = vrot.lane.b32.xlu0 %v1248, 24
        %v1254 = vpop.permute.xlu0 %1253
        %1255 = vrot.lane.b32.xlu0 %v1249, 24
        %v1256 = vpop.permute.xlu0 %1255
        %1257 = vrot.lane.b32.xlu0 %v1250, 24
        %v1258 = vpop.permute.xlu0 %1257
        %v1260 = vunpack.c.l.b16 %v961
        %v1261 = vpack.c.b16 %v1208, %v1207
        %v1262 = vpack.c.b16 %v1210, %v1209
        %v1263 = vpack.c.b16 %v1212, %v1211
        %v1264 = vpack.c.b16 %v1260, %v1213
        %1265 = vrot.lane.b32.xlu0 %v1261, 32
        %v1266 = vpop.permute.xlu0 %1265
        %1267 = vrot.lane.b32.xlu0 %v1262, 32
        %v1268 = vpop.permute.xlu0 %1267
        %1269 = vrot.lane.b32.xlu0 %v1263, 32
        %v1270 = vpop.permute.xlu0 %1269
        %1271 = vrot.lane.b32.xlu0 %v1264, 32
        %v1272 = vpop.permute.xlu0 %1271
        %v1273 = vunpack.c.l.b16 %v1163
        %v1274 = vpack.c.b16 %v1228, %v1227
        %v1275 = vpack.c.b16 %v1230, %v1229
        %v1276 = vpack.c.b16 %v1232, %v1231
        %v1277 = vpack.c.b16 %v1273, %v1233
        %1278 = vrot.lane.b32.xlu0 %v1274, 40
        %v1279 = vpop.permute.xlu0 %1278
        %1280 = vrot.lane.b32.xlu0 %v1275, 40
        %v1281 = vpop.permute.xlu0 %1280
        %1282 = vrot.lane.b32.xlu0 %v1276, 40
        %v1283 = vpop.permute.xlu0 %1282
        %1284 = vrot.lane.b32.xlu0 %v1277, 40
        %v1285 = vpop.permute.xlu0 %1284
        %v1286 = vunpack.c.l.b16 %v1176
        %v1287 = vpack.c.b16 %v1286, %v1246
        %1288 = vrot.lane.b32.xlu0 %v1195, 48
        %v1289 = vpop.permute.xlu0 %1288
        %1290 = vrot.lane.b32.xlu0 %v1196, 48
        %v1291 = vpop.permute.xlu0 %1290
        %1292 = vrot.lane.b32.xlu0 %v1197, 48
        %v1293 = vpop.permute.xlu0 %1292
        %1294 = vrot.lane.b32.xlu0 %v1287, 48
        %v1295 = vpop.permute.xlu0 %1294
        %v1297 = vunpack.c.l.b16 %v964
        %v1298 = vpack.c.b16 %v1297, %v1260
        %1299 = vrot.lane.b32.xlu0 %v1215, 56
        %v1300 = vpop.permute.xlu0 %1299
        %1301 = vrot.lane.b32.xlu0 %v1216, 56
        %v1302 = vpop.permute.xlu0 %1301
        %1303 = vrot.lane.b32.xlu0 %v1217, 56
        %v1304 = vpop.permute.xlu0 %1303
        %1305 = vrot.lane.b32.xlu0 %v1298, 56
        %v1306 = vpop.permute.xlu0 %1305
        %v1307 = vunpack.c.l.b16 %v1185
        %v1308 = vpack.c.b16 %v1307, %v1273
        %1309 = vrot.lane.b32.xlu0 %v1235, 64
        %v1310 = vpop.permute.xlu0 %1309
        %1311 = vrot.lane.b32.xlu0 %v1236, 64
        %v1312 = vpop.permute.xlu0 %1311
        %1313 = vrot.lane.b32.xlu0 %v1237, 64
        %v1314 = vpop.permute.xlu0 %1313
        %1315 = vrot.lane.b32.xlu0 %v1308, 64
        %v1316 = vpop.permute.xlu0 %1315
        %v1319 = vsel %vm692, %v1194, %v1219
        %v1322 = vsel %vm692, %v1195, %v1221
        %v1325 = vsel %vm692, %v1196, %v1223
        %v1328 = vsel %vm692, %v1197, %v1225
        %v1330 = vsel %vm710, %v1319, %v1239
        %v1332 = vsel %vm710, %v1322, %v1241
        %v1334 = vsel %vm710, %v1325, %v1243
        %v1336 = vsel %vm710, %v1328, %v1245
        %v1338 = vsel %vm728, %v1330, %v1252
        %v1340 = vsel %vm728, %v1332, %v1254
        %v1342 = vsel %vm728, %v1334, %v1256
        %v1344 = vsel %vm728, %v1336, %v1258
        %v1346 = vsel %vm746, %v1338, %v1266
        %v1348 = vsel %vm746, %v1340, %v1268
        %v1350 = vsel %vm746, %v1342, %v1270
        %v1352 = vsel %vm746, %v1344, %v1272
        %vm1353 = vcmask 326656
        %v1355 = vsel %vm1353, %v1346, %v1279
        %v1357 = vsel %vm1353, %v1348, %v1281
        %v1359 = vsel %vm1353, %v1350, %v1283
        %v1361 = vsel %vm1353, %v1352, %v1285
        %vm1362 = vcmask 392192
        %v1364 = vsel %vm1362, %v1355, %v1289
        %v1366 = vsel %vm1362, %v1357, %v1291
        %v1368 = vsel %vm1362, %v1359, %v1293
        %v1370 = vsel %vm1362, %v1361, %v1295
        %vm1371 = vcmask 457728
        %v1373 = vsel %vm1371, %v1364, %v1300
        %v1375 = vsel %vm1371, %v1366, %v1302
        %v1377 = vsel %vm1371, %v1368, %v1304
        %v1379 = vsel %vm1371, %v1370, %v1306
        %vm1380 = vcmask 523264
        %v1382 = vsel %vm1380, %v1373, %v1310
        %v1384 = vsel %vm1380, %v1375, %v1312
        %v1386 = vsel %vm1380, %v1377, %v1314
        %v1388 = vsel %vm1380, %v1379, %v1316
        %v1397 = vunpack.c.l.b16 %v224
        %v1398 = vunpack.c.l.b16 %v225
        %v1399 = vunpack.c.l.b16 %v226
        %v1400 = vunpack.c.l.b16 %v227
        %v1401 = vunpack.c.l.b16 %v228
        %v1402 = vunpack.c.l.b16 %v229
        %v1403 = vunpack.c.l.b16 %v230
        %v1404 = vunpack.c.l.b16 %v231
        %v1405 = vpack.c.b16 %v1398, %v1397
        %v1406 = vpack.c.b16 %v1400, %v1399
        %v1407 = vpack.c.b16 %v1402, %v1401
        %v1408 = vpack.c.b16 %v1404, %v1403
        %1409 = vrot.lane.b32.xlu0 %v1405, 72
        %v1410 = vpop.permute.xlu0 %1409
        %1411 = vrot.lane.b32.xlu0 %v1406, 72
        %v1412 = vpop.permute.xlu0 %1411
        %1413 = vrot.lane.b32.xlu0 %v1407, 72
        %v1414 = vpop.permute.xlu0 %1413
        %1415 = vrot.lane.b32.xlu0 %v1408, 72
        %v1416 = vpop.permute.xlu0 %1415
        %vm1417 = vcmask 588800
        %v1419 = vsel %vm1417, %v1382, %v1410
        %v1421 = vsel %vm1417, %v1384, %v1412
        %v1423 = vsel %vm1417, %v1386, %v1414
        %v1425 = vsel %vm1417, %v1388, %v1416
        %v1426 = vld [vmem:[%s3] sm:$0xf]
        %v1427 = vld [vmem:[%s3 + $0x4] sm:$0xf]
        %v1428 = vld [vmem:[%s3 + $0x8] sm:$0xf]
        %v1429 = vld [vmem:[%s3 + $0xc] sm:$0xf]
        %v1430 = vld [vmem:[%s3 + $0x10] sm:$0xf]
        %v1431 = vld [vmem:[%s3 + $0x14] sm:$0xf]
        %v1432 = vld [vmem:[%s3 + $0x18] sm:$0xf]
        %v1433 = vld [vmem:[%s3 + $0x1c] sm:$0xf]
        %v1434 = vld [vmem:[%s3 + $0x20] sm:$0xf]
        %v1435 = vld [vmem:[%s3 + $0x24] sm:$0x3]
        %v1436 = vld [vmem:[%s4] sm:$0x1]
        %v1438 = vlaneseq
        %v1439 = vshrl.u32 %v1438, 7
        %v1440 = vsub.s32 0, %v1439
        %v1441 = vrot.slane %v1436, %v1440
        %v1453 = vunpack.c.l.b16 %v1426
        %v1454 = vunpack.c.l.b16 %v1427
        %v1455 = vunpack.c.l.b16 %v1428
        %v1456 = vunpack.c.l.b16 %v1429
        %v1457 = vunpack.c.l.b16 %v1430
        %v1458 = vunpack.c.l.b16 %v1431
        %v1459 = vunpack.c.l.b16 %v1432
        %v1460 = vunpack.c.l.b16 %v1433
        %v1461 = vunpack.c.l.b16 %v1434
        %v1462 = vunpack.c.l.b16 %v1435
        %v1463 = vpack.c.b16 %v1454, %v1453
        %v1464 = vpack.c.b16 %v1456, %v1455
        %v1465 = vpack.c.b16 %v1458, %v1457
        %v1466 = vpack.c.b16 %v1460, %v1459
        %v1467 = vpack.c.b16 %v1462, %v1461
        %vm1472 = vcmask 621568
        %v1473 = vsel %vm1472, %v1419, 0
        %v1475 = vsel %vm1472, %v1421, 0
        %v1477 = vsel %vm1472, %v1423, 0
        %v1479 = vsel %vm1472, %v1425, 0
        %vm1481 = vcmask 1045504
        %v1483 = vsel %vm1481, %v1467, 0
        %1485 = vmatprep.subr.bf16.mxu0 0
        %1486 = vmatpush1.bf16.msra.mxu0 0
        %1487 = vmatprep.subr.bf16.mxu0 0
        %1488 = vmatpush1.bf16.msra.mxu0 0
        %1489 = vmatprep.subr.bf16.mxu0 0
        %1490 = vmatpush1.bf16.msra.mxu0 0
        %1491 = vmatprep.subr.bf16.mxu0 0
        %1492 = vmatpush1.bf16.msra.mxu0 %v1483
        %1493 = vmatprep.subr.bf16.mxu0 0
        %1494 = vmatpush1.bf16.msra.mxu0 %v1466
        %1495 = vmatprep.subr.bf16.mxu0 0
        %1496 = vmatpush1.bf16.msra.mxu0 %v1465
        %1497 = vmatprep.subr.bf16.mxu0 0
        %1498 = vmatpush1.bf16.msra.mxu0 %v1464
        %1499 = vmatprep.subr.bf16.mxu0 0
        %1500 = vmatpush1.bf16.msra.mxu0 %v1463
        %1501 = vmatprep.subr.bf16.mxu0 0
        %1502 = vmatpush2.bf16.msra.mxu0 0
        %1503 = vmatprep.subr.bf16.mxu0 0
        %1504 = vmatpush2.bf16.msra.mxu0 0
        %1505 = vmatprep.subr.bf16.mxu0 0
        %1506 = vmatpush2.bf16.msra.mxu0 0
        %1507 = vmatprep.subr.bf16.mxu0 0
        %1508 = vmatpush2.bf16.msra.mxu0 0
        %1509 = vmatprep.subr.bf16.mxu0 0
        %1510 = vmatpush2.bf16.msra.mxu0 0
        %1511 = vmatprep.subr.bf16.mxu0 0
        %1512 = vmatpush2.bf16.msra.mxu0 0
        %1513 = vmatprep.subr.bf16.mxu0 0
        %1514 = vmatpush2.bf16.msra.mxu0 0
        %1515 = vmatprep.subr.bf16.mxu0 0
        %1516 = vmatpush2.bf16.msra.mxu0 0
        %1517 = vmatprep.mubr.bf16.mxu0 0
        %1518 = vmatmul.mubr.bf16.gmra.mxu0 %v1473
        %v1519 = vpop.f32.mrf.mxu0
        %v1520 = vadd.f32 %v1441, %v1519
        %v1521 = vpop.f32.mrf.mxu0
        %v1522 = vpop.f32.mrf.mxu0
        %v1523 = vadd.f32 %v1441, %v1522
        %v1524 = vpop.f32.mrf.mxu0
        %1525 = vmatprep.mubr.bf16.mxu0 0
        %1526 = vmatmul.mubr.bf16.gmra.mxu0 %v1475
        %v1527 = vpop.f32.mrf.mxu0
        %v1528 = vadd.f32 %v1441, %v1527
        %v1529 = vpop.f32.mrf.mxu0
        %v1530 = vpop.f32.mrf.mxu0
        %v1531 = vadd.f32 %v1441, %v1530
        %v1532 = vpop.f32.mrf.mxu0
        %1533 = vmatprep.mubr.bf16.mxu0 0
        %1534 = vmatmul.mubr.bf16.gmra.mxu0 %v1477
        %v1535 = vpop.f32.mrf.mxu0
        %v1536 = vadd.f32 %v1441, %v1535
        %v1537 = vpop.f32.mrf.mxu0
        %v1538 = vpop.f32.mrf.mxu0
        %v1539 = vadd.f32 %v1441, %v1538
        %v1540 = vpop.f32.mrf.mxu0
        %1541 = vmatprep.mubr.bf16.mxu0 0
        %1542 = vmatmul.mubr.bf16.gmra.mxu0 %v1479
        %v1543 = vpop.f32.mrf.mxu0
        %v1544 = vadd.f32 %v1441, %v1543
        %v1545 = vpop.f32.mrf.mxu0
        %v1546 = vpop.f32.mrf.mxu0
        %v1547 = vadd.f32 %v1441, %v1546
        %v1548 = vpop.f32.mrf.mxu0
        %1549 = vdwg.mxu0
        %v1550 = vmax.f32 %v1520, 0.0
        %v1551 = vmax.f32 %v1523, 0.0
        %v1552 = vmax.f32 %v1528, 0.0
        %v1553 = vmax.f32 %v1531, 0.0
        %v1554 = vmax.f32 %v1536, 0.0
        %v1555 = vmax.f32 %v1539, 0.0
        %v1556 = vmax.f32 %v1544, 0.0
        %v1557 = vmax.f32 %v1547, 0.0
        %1558 = vst.msk [vmem:[%s217] sm:$0xff] %vm692, %v1550
        %1559 = vst.msk [vmem:[%s217 + $0x8] sm:$0xff] %vm692, %v1551
        %1560 = vst.msk [vmem:[%s217 + $0x10] sm:$0xff] %vm692, %v1552
        %1561 = vst.msk [vmem:[%s217 + $0x18] sm:$0xff] %vm692, %v1553
        %1562 = vst.msk [vmem:[%s217 + $0x20] sm:$0xff] %vm692, %v1554
        %1563 = vst.msk [vmem:[%s217 + $0x28] sm:$0xff] %vm692, %v1555
        %1564 = vst.msk [vmem:[%s217 + $0x30] sm:$0xff] %vm692, %v1556
        %1565 = vst.msk [vmem:[%s217 + $0x38] sm:$0xff] %vm692, %v1557
        %s1566 = sand.u32 %s137, 1
        %s1567 = scalar_lea.sflag [#allocation5], %s1566
        %s1568 = sand.u32 %s137, 1
        %s1569 = smul.addr %s1568, 64
        %s1570 = scalar_lea.vmem [#allocation4], %s1569
        // Predicated region
        $region41: #{tpu_custom_call.1} parent=39 // pred_check
          %p1571 = pneg %p147
        $region42: #{tpu_custom_call.1} parent=39 // pred_check_branch
          %1573 = sbr.rel (%p1571) target = $region44
        $region43: #{tpu_custom_call.1} parent=39 // pred_region
          %s1575 = ssub.s32 1024, 1024
          %1576 = vsyncadd %s1567, %s1575
          %s1577 = smul.addr %s19, 8
          %s1578 = smul.addr %s1577, 128
          %s1579 = scalar_lea.hbm %s5, %s1578
          %s1580 = sshll.u32 %s1570, 4
          %s1581 = int_to_ptr.vmem [resolvable:$true] %s1580
          %1586 = dma.vmem_to_hbm [thread:$0]  %s1581, 1024, %s1579, %s1567, 128, 128, 8
        $region44: #{tpu_custom_call.1} parent=39 // pred_fallthru
          _
      $region40: #{tpu_custom_call.1} parent=5 // pred_fallthru
        _
      %p1587 = scmp.le.s32.totalorder 2, %s14
      // Predicated region
      $region45: #{tpu_custom_call.1} parent=5 // pred_check
        %p1588 = pneg %p1587
      $region46: #{tpu_custom_call.1} parent=5 // pred_check_branch
        %1590 = sbr.rel (%p1588) target = $region48
      $region47: #{tpu_custom_call.1} parent=5 // pred_region
        %s1591 = ssub.s32 %s14, 2
        // Predicated region
        $region49: #{tpu_custom_call.1} parent=47 // pred_check
          %p1592 = pneg %p153
        $region50: #{tpu_custom_call.1} parent=47 // pred_check_branch
          %1594 = sbr.rel (%p1592) target = $region52
        $region51: #{tpu_custom_call.1} parent=47 // pred_region
          %s1595 = sand.u32 %s138, 1
          %s1596 = scalar_lea.sflag [#allocation5], %s1595
          %s1597 = sand.u32 %s138, 1
          %s1598 = smul.addr %s1597, 64
          %s1599 = scalar_lea.vmem [#allocation4], %s1598
          %1600 = dma.done %s1596, 1024
        $region52: #{tpu_custom_call.1} parent=47 // pred_fallthru
          _
      $region48: #{tpu_custom_call.1} parent=5 // pred_fallthru
        _
    $region6: #{tpu_custom_call.1} parent=1 // loop_footer
      %s18 = sadd.s32 1, %s14
    $region7: #{tpu_custom_call.1} parent=1 // loop_footer_branch
      %13 = sbr.rel target = $region3
    $region8: #{tpu_custom_call.1} parent=1 // loop_exit
      _
    %1601 = vsyncpa [#allocation5], 1
    %s1602 = scalar_lea.sflag [#allocation5], 1
    %1603 = vsyncpa %s1602, 1

</llo_original>
